<compile_context>
chip_gen: v5e
topology: v5e:2x2
jax: 0.10.0
libtpu: 0.0.40
codegen_flags: <defaults>
</compile_context>

<pallas_src>
import functools
import numpy as np
import jax
import jax.numpy as jnp
from jax import lax
from jax.experimental import pallas as pl
from jax.experimental.pallas import tpu as pltpu


# ----------------------------- VMEM planning ---------------------------------

def _round_up(n, m):
    return ((n + m - 1) // m) * m


def _vmem_capacity_bytes():
    try:
        return int(pltpu.get_tpu_info().vmem_capacity_bytes)
    except Exception:
        return 64 * 1024 * 1024      # conservative (v7x-sized) fallback


def _vmem_plan():
    """Per-generation VMEM limit, pipelined-block budget and weight buffering depth."""
    cap = _vmem_capacity_bytes()
    if cap >= 96 * 1024 * 1024:                      # v5e / v6e: 128 MiB physical
        limit = 100 * 1024 * 1024
        w_buffers = 3                                # triple-buffer the dominant stream
    else:                                            # v7x: 64 MiB physical
        limit = max(min(48 * 1024 * 1024, cap - 12 * 1024 * 1024), 16 * 1024 * 1024)
        w_buffers = 2                                # DMA-throughput bound: spend VMEM on CB
    budget = max(limit - 8 * 1024 * 1024, 8 * 1024 * 1024)   # compiler-scratch headroom
    return limit, budget, w_buffers


def _block_bytes(CB, PB, B, HW, x_bytes, w_bytes, o_bytes, c_bytes, w_buffers):
    w = w_buffers * CB * _round_up(HW, 8) * _round_up(PB, 128) * w_bytes
    xin = 2 * B * _round_up(CB, 8) * _round_up(HW, 128) * x_bytes
    out = 2 * B * _round_up(CB, 8) * _round_up(PB, 128) * o_bytes
    xt = CB * _round_up(B, 8) * _round_up(HW, 128) * c_bytes
    return w + xin + out + xt


def _pick_blocks(C, B, HW, budget, x_bytes, w_bytes, o_bytes, c_bytes, w_buffers):
    """CB = channels/step (divisor of C, preferring an even number of grid steps so
    both v7x TensorCores get work); PB = weight output-column tile (== HW unless even
    CB=1 would blow the VMEM budget, in which case we tile the p axis)."""
    def fits(cb, pb):
        return _block_bytes(cb, pb, B, HW, x_bytes, w_bytes, o_bytes,
                            c_bytes, w_buffers) <= budget

    divisors = [d for d in range(1, C + 1) if C % d == 0]
    even = [d for d in divisors if (C // d) % 2 == 0]
    for pool in (even, divisors):
        ok = [d for d in pool if fits(d, HW)]
        if ok:
            return max(ok), HW
    # Fallback for very large HW: tile the weight's output (p) dimension.
    pb = _round_up(HW, 128)
    while pb > 128 and not fits(1, pb):
        pb -= 128
    return 1, pb


# ------------------------------- kernel ---------------------------------------

def _spatial_conv_kernel(x_ref, w_ref, b_ref, o_ref, xt_ref, *, batch):
    # x_ref : (B, CB, HW)  activations, native layout (streamed as stored, no wrapper cast)
    # w_ref : (CB, HW, PB) A^T block — contraction dim q is second-to-last (MXU-natural)
    # b_ref : (1, PB)      bias slice (torch adds bias along the spatial axis)
    # o_ref : (B, CB, PB)  output, native layout
    # xt_ref: (CB, B, HW)  VMEM scratch: x with the matmul-batch (channel) dim leading.
    @pl.when(pl.program_id(1) == 0)            # rebuild only when the channel block changes
    def _assemble():
        for b in range(batch):                 # tiny VMEM-only relayout, << weight DMA
            xt_ref[:, b, :] = x_ref[b].astype(xt_ref.dtype)

    y = lax.dot_general(                       # (CB, B, PB), f32 accumulation on the MXU
        xt_ref[...], w_ref[...],
        dimension_numbers=(((2,), (1,)), ((0,), (0,))),
        preferred_element_type=jnp.float32)
    bias = b_ref[...]                          # (1, PB), f32
    for b in range(batch):
        o_ref[b] = (y[:, b, :] + bias).astype(o_ref.dtype)


# ------------------------------- wrapper ---------------------------------------

def prepare_weight(weight, dtype=jnp.bfloat16):
    """One-time (init-side) weight prep: A -> A^T layout (C, q, p) + cast to the streaming
    dtype.  Store the result as the parameter; do NOT call this per forward pass."""
    return jnp.transpose(jnp.asarray(weight), (0, 2, 1)).astype(dtype)


def spatial_conv2d_linear(x, weight_t, bias, *, out_dtype=None):
    """x: (B, C, H, W); weight_t: prepare_weight(A), shape (C, HW, HW); bias: (C,) or None.
    torch's `(B,C,HW) + bias(C,)` broadcast requires C == H*W."""
    B, C, H, W = x.shape
    HW = H * W
    assert C == HW, "torch's `(B,C,HW) + bias(C,)` broadcast requires C == H*W"
    assert weight_t.shape == (C, HW, HW)
    out_dtype = x.dtype if out_dtype is None else out_dtype

    x_flat = x.reshape(B, C, HW)                      # free reshape — no transpose, no cast
    if bias is None:
        bias = jnp.zeros((HW,), jnp.float32)
    bias2d = jnp.asarray(bias, jnp.float32).reshape(1, HW)

    cdtype = weight_t.dtype                           # streaming/compute dtype (bf16 by default)
    x_bytes = np.dtype(x.dtype).itemsize
    w_bytes = np.dtype(cdtype).itemsize
    o_bytes = np.dtype(out_dtype).itemsize

    vmem_limit, budget, w_buffers = _vmem_plan()
    CB, PB = _pick_blocks(C, B, HW, budget, x_bytes, w_bytes, o_bytes,
                          np.dtype(cdtype).itemsize, w_buffers)
    grid = (C // CB, pl.cdiv(HW, PB))

    w_map = lambda c, p: (c, 0, p)
    if w_buffers > 2:
        try:    # deeper buffering of the dominant stream where this jax exposes pipeline_mode
            w_spec = pl.BlockSpec((CB, HW, PB), w_map, pipeline_mode=pl.Buffered(w_buffers))
        except (TypeError, AttributeError):
            w_spec = pl.BlockSpec((CB, HW, PB), w_map)
    else:
        w_spec = pl.BlockSpec((CB, HW, PB), w_map)

    cost = pl.CostEstimate(
        flops=2 * B * C * HW * HW,
        transcendentals=0,
        bytes_accessed=(C * HW * HW * w_bytes              # weight stream (dominant)
                        + B * C * HW * (x_bytes + o_bytes)
                        + HW * 4),
    )

    out_flat = pl.pallas_call(
        functools.partial(_spatial_conv_kernel, batch=B),
        out_shape=jax.ShapeDtypeStruct((B, C, HW), out_dtype),
        grid_spec=pltpu.PrefetchScalarGridSpec(
            num_scalar_prefetch=0,
            grid=grid,
            in_specs=[
                pl.BlockSpec((B, CB, HW), lambda c, p: (0, c, 0)),   # x, native layout
                w_spec,                                              # A^T block
                pl.BlockSpec((1, PB), lambda c, p: (0, p)),          # bias slice
            ],
            out_specs=pl.BlockSpec((B, CB, PB), lambda c, p: (0, c, p)),
            scratch_shapes=[pltpu.VMEM((CB, B, HW), cdtype)],
        ),
        compiler_params=pltpu.CompilerParams(
            dimension_semantics=("parallel", "arbitrary"),
            vmem_limit_bytes=vmem_limit,
        ),
        cost_estimate=cost,
    )(x_flat, weight_t, bias2d)

    return out_flat.reshape(B, C, H, W)


# ---------------------------- init / reference ---------------------------------

def init_perm_weight(key, C, H, W):
    """'perm' init: weight[i][j, k[i, j]] = 1, scaled by sqrt(1/3).  (C, HW, HW) f32."""
    HW = H * W
    k = jax.random.randint(key, (C, HW), 0, HW)
    onehot = jax.nn.one_hot(k, HW, dtype=jnp.float32)
    return jnp.sqrt(jnp.float32(1.0 / 3.0)) * onehot


def init_bias(key, C):
    """bias = 1/C * (2*rand(C) - 1)."""
    u = jax.random.uniform(key, (C,), dtype=jnp.float32)
    return (1.0 / C) * (2.0 * u - 1.0)


def reference_numpy(x, weight, bias, H, W):
    """Implementation-independent f32 reference (numpy) of the torch forward."""
    B, C = x.shape[0], x.shape[1]
    HW = H * W
    xf = x.reshape(B, C, HW)
    y = np.einsum("bcq,cpq->bcp", xf, weight)   # x @ A^T per channel
    y = y + bias                                # (C,) broadcasts along HW (needs C == HW)
    return y.reshape(B, C, H, W)


if __name__ == "__main__":
    B, C, H, W = 2, 64, 8, 8          # C == H*W, as the torch bias broadcast requires
    key = jax.random.PRNGKey(0)
    k_x, k_w, k_b = jax.random.split(key, 3)

    x = jax.random.normal(k_x, (B, C, H, W), dtype=jnp.float32)
    weight = init_perm_weight(k_w, C, H, W)                   # (C, HW, HW) f32, torch layout
    bias = init_bias(k_b, C)                                  # (C,)

    # One-time init-side prep (A^T layout + bf16 cast) — NOT part of the per-call path.
    weight_t = jax.block_until_ready(prepare_weight(weight))

    out = spatial_conv2d_linear(x, weight_t, bias)
    out = jax.block_until_ready(out)

    # Reference uses the same bf16-rounded operands the kernel computes with, so the check
    # isolates kernel correctness from the intentional bf16 streaming precision.
    x_r = np.asarray(x.astype(jnp.bfloat16).astype(jnp.float32))
    w_r = np.asarray(weight.astype(jnp.bfloat16).astype(jnp.float32))
    ref = reference_numpy(x_r, w_r, np.asarray(bias, dtype=np.float32), H, W)

    np.testing.assert_allclose(np.asarray(out, dtype=np.float32), ref, rtol=1e-4, atol=1e-4)
    print("KERNEL_OK")
</pallas_src>

<mosaic_0001>
module attributes {stable_mosaic.version = 11 : i64} {
  func.func @_spatial_conv_kernel(%arg0: i32, %arg1: i32, %arg2: memref<2x32x64xf32, #tpu.memory_space<vmem>>, %arg3: memref<32x64x64xbf16, #tpu.memory_space<vmem>>, %arg4: memref<1x64xf32, #tpu.memory_space<vmem>>, %arg5: memref<2x32x64xf32, #tpu.memory_space<vmem>>, %arg6: memref<32x2x64xbf16, #tpu.memory_space<vmem>>) attributes {dimension_semantics = [#tpu.dimension_semantics<parallel>, #tpu.dimension_semantics<arbitrary>], iteration_bounds = array<i64: 2, 1>, scalar_prefetch = 0 : i64, scratch_operands = 1 : i64, tpu.core_type = #tpu.core_type<tc>, window_params = [{transform_indices = @transform_0, window_bounds = array<i64: 2, 32, 64>}, {transform_indices = @transform_1, window_bounds = array<i64: 32, 64, 64>}, {transform_indices = @transform_2, window_bounds = array<i64: 1, 64>}, {transform_indices = @transform_3, window_bounds = array<i64: 2, 32, 64>}]} {
    %c0_i32 = arith.constant 0 : i32
    %0 = arith.cmpi eq, %arg1, %c0_i32 : i32
    %1 = arith.extui %0 : i1 to i32
    %c0_i32_0 = arith.constant 0 : i32
    %2 = arith.cmpi ne, %1, %c0_i32_0 : i32
    scf.if %2 {
      %c0_13 = arith.constant 0 : index
      %c0_14 = arith.constant 0 : index
      %c0_15 = arith.constant 0 : index
      %21 = vector.load %arg2[%c0_13, %c0_14, %c0_15] : memref<2x32x64xf32, #tpu.memory_space<vmem>>, vector<1x32x64xf32>
      %22 = vector.shape_cast %21 : vector<1x32x64xf32> to vector<32x64xf32>
      %23 = arith.truncf %22 : vector<32x64xf32> to vector<32x64xbf16>
      %c0_16 = arith.constant 0 : index
      %c0_17 = arith.constant 0 : index
      %c0_18 = arith.constant 0 : index
      %24 = vector.load %arg6[%c0_16, %c0_17, %c0_18] : memref<32x2x64xbf16, #tpu.memory_space<vmem>>, vector<32x1x64xbf16>
      %25 = vector.shape_cast %24 : vector<32x1x64xbf16> to vector<32x64xbf16>
      %26 = vector.shape_cast %23 : vector<32x64xbf16> to vector<32x1x64xbf16>
      tpu.vector_store %arg6[%c0_16, %c0_17, %c0_18], %26 {strides = array<i32>} : memref<32x2x64xbf16, #tpu.memory_space<vmem>>, vector<32x1x64xbf16>,
      %c1_19 = arith.constant 1 : index
      %c0_20 = arith.constant 0 : index
      %c0_21 = arith.constant 0 : index
      %27 = vector.load %arg2[%c1_19, %c0_20, %c0_21] : memref<2x32x64xf32, #tpu.memory_space<vmem>>, vector<1x32x64xf32>
      %28 = vector.shape_cast %27 : vector<1x32x64xf32> to vector<32x64xf32>
      %29 = arith.truncf %28 : vector<32x64xf32> to vector<32x64xbf16>
      %c0_22 = arith.constant 0 : index
      %c1_23 = arith.constant 1 : index
      %c0_24 = arith.constant 0 : index
      %30 = vector.load %arg6[%c0_22, %c1_23, %c0_24] : memref<32x2x64xbf16, #tpu.memory_space<vmem>>, vector<32x1x64xbf16>
      %31 = vector.shape_cast %30 : vector<32x1x64xbf16> to vector<32x64xbf16>
      %32 = vector.shape_cast %29 : vector<32x64xbf16> to vector<32x1x64xbf16>
      tpu.vector_store %arg6[%c0_22, %c1_23, %c0_24], %32 {strides = array<i32>} : memref<32x2x64xbf16, #tpu.memory_space<vmem>>, vector<32x1x64xbf16>,
    } else {
    }
    %c0 = arith.constant 0 : index
    %c0_1 = arith.constant 0 : index
    %c0_2 = arith.constant 0 : index
    %3 = vector.load %arg6[%c0, %c0_1, %c0_2] : memref<32x2x64xbf16, #tpu.memory_space<vmem>>, vector<32x2x64xbf16>
    %c0_3 = arith.constant 0 : index
    %c0_4 = arith.constant 0 : index
    %c0_5 = arith.constant 0 : index
    %4 = vector.load %arg3[%c0_3, %c0_4, %c0_5] : memref<32x64x64xbf16, #tpu.memory_space<vmem>>, vector<32x64x64xbf16>
    %cst = arith.constant dense<0.000000e+00> : vector<32x2x64xf32>
    %5 = tpu.matmul %3, %4, %cst {dimension_numbers = #tpu.dot_dimension_numbers<[2], [1], [1], [2], [0, 0, 0, 1, 1, 2], [0], [0]>} : vector<32x2x64xbf16>, vector<32x64x64xbf16>, vector<32x2x64xf32> -> vector<32x2x64xf32>
    %c0_6 = arith.constant 0 : index
    %c0_7 = arith.constant 0 : index
    %6 = vector.load %arg4[%c0_6, %c0_7] : memref<1x64xf32, #tpu.memory_space<vmem>>, vector<1x64xf32>
    %7 = vector.extract_strided_slice %5 {offsets = [0, 0, 0], sizes = [32, 1, 64], strides = [1, 1, 1]} : vector<32x2x64xf32> to vector<32x1x64xf32>
    %8 = vector.shape_cast %7 : vector<32x1x64xf32> to vector<32x64xf32>
    %9 = vector.broadcast %6 : vector<1x64xf32> to vector<32x64xf32>
    %10 = arith.addf %8, %9 : vector<32x64xf32>
    %c0_8 = arith.constant 0 : index
    %c0_9 = arith.constant 0 : index
    %c0_10 = arith.constant 0 : index
    %11 = vector.load %arg5[%c0_8, %c0_9, %c0_10] : memref<2x32x64xf32, #tpu.memory_space<vmem>>, vector<1x32x64xf32>
    %12 = vector.shape_cast %11 : vector<1x32x64xf32> to vector<32x64xf32>
    %13 = vector.shape_cast %10 : vector<32x64xf32> to vector<1x32x64xf32>
    tpu.vector_store %arg5[%c0_8, %c0_9, %c0_10], %13 {strides = array<i32>} : memref<2x32x64xf32, #tpu.memory_space<vmem>>, vector<1x32x64xf32>,
    %14 = vector.extract_strided_slice %5 {offsets = [0, 1, 0], sizes = [32, 1, 64], strides = [1, 1, 1]} : vector<32x2x64xf32> to vector<32x1x64xf32>
    %15 = vector.shape_cast %14 : vector<32x1x64xf32> to vector<32x64xf32>
    %16 = vector.broadcast %6 : vector<1x64xf32> to vector<32x64xf32>
    %17 = arith.addf %15, %16 : vector<32x64xf32>
    %c1 = arith.constant 1 : index
    %c0_11 = arith.constant 0 : index
    %c0_12 = arith.constant 0 : index
    %18 = vector.load %arg5[%c1, %c0_11, %c0_12] : memref<2x32x64xf32, #tpu.memory_space<vmem>>, vector<1x32x64xf32>
    %19 = vector.shape_cast %18 : vector<1x32x64xf32> to vector<32x64xf32>
    %20 = vector.shape_cast %17 : vector<32x64xf32> to vector<1x32x64xf32>
    tpu.vector_store %arg5[%c1, %c0_11, %c0_12], %20 {strides = array<i32>} : memref<2x32x64xf32, #tpu.memory_space<vmem>>, vector<1x32x64xf32>,
    return
  }
  func.func @transform_0(%arg0: i32, %arg1: i32) -> (i32, i32, i32) {
    %c0_i32 = arith.constant 0 : i32
    %c0_i32_0 = arith.constant 0 : i32
    %c0_i32_1 = arith.constant 0 : i32
    return %c0_i32, %arg0, %c0_i32_0 : i32, i32, i32
  }
  func.func @transform_1(%arg0: i32, %arg1: i32) -> (i32, i32, i32) {
    %c0_i32 = arith.constant 0 : i32
    %c0_i32_0 = arith.constant 0 : i32
    return %arg0, %c0_i32, %arg1 : i32, i32, i32
  }
  func.func @transform_2(%arg0: i32, %arg1: i32) -> (i32, i32) {
    %c0_i32 = arith.constant 0 : i32
    %c0_i32_0 = arith.constant 0 : i32
    return %c0_i32, %arg1 : i32, i32
  }
  func.func @transform_3(%arg0: i32, %arg1: i32) -> (i32, i32, i32) {
    %c0_i32 = arith.constant 0 : i32
    %c0_i32_0 = arith.constant 0 : i32
    return %c0_i32, %arg0, %arg1 : i32, i32, i32
  }
}

</mosaic_0001>

<llo_original>
// kernel: tpu_custom_call.1
$region0: #{tpu_custom_call.1}
  #allocation0 [shape = 'u32[]', space=smem, size = 0x4, offset = 0x4, fixed_abs, tag = 'smem constant byte address 0x4 - core index']
  #allocation1 [shape = 'u32[72,128]{1,0:T(1,128)}', space=vmem, size = 0x9000, scoped, tag = 'internal scratch']
  #allocation2 [shape = 'bf16[32,2,64]{2,1,0:T(2,128)(2,1)}', space=vmem, size = 0x4000, scoped, tag = 'scratch operand']
  #allocation9 [shape = 's32[]', space=sflag, size = 0x4, offset = 0, fixed_abs, tag = 'sflag constant byte address 0x0 - dummy sync flag']
  #allocation11 [shape = 's32[]', space=sflag, size = 0x4, offset = 0, fixed_abs, tag = 'sflag constant byte address 0x0 - dummy sync flag']
  %s0 = inlined_call_operand.hbm [shape: f32[2,64,64], index: 0, kind: input, shape index: {}]
  %s1 = inlined_call_operand.hbm [shape: bf16[64,64,64], index: 1, kind: input, shape index: {}]
  %s2 = inlined_call_operand.vmem [shape: f32[1,64], index: 2, kind: input, shape index: {}]
  %s3 = inlined_call_operand.hbm [shape: f32[2,64,64], index: 3, kind: output, shape index: {}]
  %s4 = sld [smem:[#allocation0]]
  $region57: #{tpu_custom_call.1} parent=0
    _
  %s6 = ssub.s32 1, %s4
  %s7 = scalar_select 0, %s6, %s4
  $region1: #{tpu_custom_call.1} parent=0
    #allocation3 [shape = 'u8[65536]{0}', space=vmem, size = 0x10000, scoped, tag = 'input window, operand 0']
    #allocation4 [shape = 's32[2]{0}', space=sflag, size = 0x8, scoped, tag = 'scoped memory for tpu_custom_call.1']
    #allocation5 [shape = 's32[2]{0}', space=sflag, size = 0x8, scoped, tag = 'scoped memory for tpu_custom_call.1']
    #allocation6 [shape = 'u8[1048576]{0}', space=vmem, size = 0x100000, scoped, tag = 'input window, operand 1']
    #allocation7 [shape = 's32[2]{0}', space=sflag, size = 0x8, scoped, tag = 'scoped memory for tpu_custom_call.1']
    #allocation8 [shape = 'u8[65536]{0}', space=vmem, size = 0x10000, scoped, tag = 'output window, operand 0']
    %8 = vsyncpa [#allocation4], 0
    %s9 = scalar_lea.sflag [#allocation4], 1
    %10 = vsyncpa %s9, 0
    %11 = vsyncpa [#allocation7], 0
    %s12 = scalar_lea.sflag [#allocation7], 1
    %13 = vsyncpa %s12, 0
    %14 = vsyncpa [#allocation5], 0
    %s15 = scalar_lea.sflag [#allocation5], 1
    %16 = vsyncpa %s15, 0
    loop: start=0, step=1, limit=4
    $region2: #{tpu_custom_call.1} parent=1 // loop_pre_header
      _
    $region3: #{tpu_custom_call.1} parent=1 // loop_header
      %s18 = sphi 0, %s22
      %p19 = scmp.ge.s32.totalorder %s18, 4
      %s25 = sphi 0, %s37
      %s26 = sphi 0, %s33
      %s27 = sphi 0, %s25
      %s28 = sphi 0, %s26
      %s29 = sphi 0, %s27
      %s30 = sphi 0, %s28
      %s40 = sphi 0, %s42
      %s43 = sphi 0, %s40
      %s44 = sphi 0, %s43
      %s60 = sphi 0, %s44
      %s68 = sphi 0, %s70
      %s71 = sphi 0, %s68
      %s72 = sphi 0, %s71
      %s88 = sphi 0, %s72
      %s94 = sphi 0, %s96
      %s97 = sphi 0, %s94
      %s98 = sphi 0, %s97
      %s114 = sphi 0, %s98
      %s122 = sphi 0, %s124
      %s125 = sphi 0, %s122
      %s126 = sphi 0, %s125
      %s142 = sphi 0, %s126
    $region4: #{tpu_custom_call.1} parent=1 // loop_header_branch
      %21 = sbr.rel (%p19) target = $region8
    $region5: #{tpu_custom_call.1} parent=1 // loop_body
      %s23 = ssub.s32 %s18, 1
      %s24 = ssub.s32 %s18, 2
      %s31 = sadd.s32 1, %s26
      %p32 = scmp.ge.s32.totalorder %s31, 1
      %s33 = scalar_select %p32, 0, %s31
      %s34 = sadd.s32 1, %s25
      %s35 = scalar_select %p32, %s34, %s25
      %p36 = scmp.ge.s32.totalorder %s35, 2
      %s37 = scalar_select %p36, 0, %s35
      %s38 = ssub.s32 %s25, %s37
      %p39 = scmp.eq.s32.totalorder %s38, 0
      %s41 = sadd.s32 %s40, 1
      %s42 = scalar_select %p39, %s40, %s41
      %p45 = pneg %p39
      %p46 = scmp.eq.s32.totalorder %s18, 1
      %p47 = por %p45, %p46
      %p48 = scmp.ne.s32.totalorder %s40, %s43
      %p49 = scmp.eq.s32.totalorder %s18, 0
      %p50 = por %p48, %p49
      %p51 = scmp.ne.s32.totalorder %s40, %s43
      %p52 = scmp.eq.s32.totalorder %s23, 1
      %p53 = por %p51, %p52
      %p54 = scmp.ne.s32.totalorder %s43, %s44
      %p55 = scmp.eq.s32.totalorder %s23, 0
      %p56 = por %p54, %p55
      %p57 = scmp.ne.s32.totalorder %s43, %s44
      %p58 = scmp.eq.s32.totalorder %s24, 1
      %p59 = por %p57, %p58
      %p61 = scmp.ne.s32.totalorder %s44, %s60
      %p62 = scmp.eq.s32.totalorder %s24, 0
      %p63 = por %p61, %p62
      %s64 = ssub.s32 %s25, %s37
      %s65 = ssub.s32 %s26, %s33
      %s66 = sor.u32 %s64, %s65
      %p67 = scmp.eq.s32.totalorder %s66, 0
      %s69 = sadd.s32 %s68, 1
      %s70 = scalar_select %p67, %s68, %s69
      %p73 = pneg %p67
      %p74 = scmp.eq.s32.totalorder %s18, 1
      %p75 = por %p73, %p74
      %p76 = scmp.ne.s32.totalorder %s68, %s71
      %p77 = scmp.eq.s32.totalorder %s18, 0
      %p78 = por %p76, %p77
      %p79 = scmp.ne.s32.totalorder %s68, %s71
      %p80 = scmp.eq.s32.totalorder %s23, 1
      %p81 = por %p79, %p80
      %p82 = scmp.ne.s32.totalorder %s71, %s72
      %p83 = scmp.eq.s32.totalorder %s23, 0
      %p84 = por %p82, %p83
      %p85 = scmp.ne.s32.totalorder %s71, %s72
      %p86 = scmp.eq.s32.totalorder %s24, 1
      %p87 = por %p85, %p86
      %p89 = scmp.ne.s32.totalorder %s72, %s88
      %p90 = scmp.eq.s32.totalorder %s24, 0
      %p91 = por %p89, %p90
      %s92 = ssub.s32 %s26, %s33
      %p93 = scmp.eq.s32.totalorder %s92, 0
      %s95 = sadd.s32 %s94, 1
      %s96 = scalar_select %p93, %s94, %s95
      %p99 = pneg %p93
      %p100 = scmp.eq.s32.totalorder %s18, 1
      %p101 = por %p99, %p100
      %p102 = scmp.ne.s32.totalorder %s94, %s97
      %p103 = scmp.eq.s32.totalorder %s18, 0
      %p104 = por %p102, %p103
      %p105 = scmp.ne.s32.totalorder %s94, %s97
      %p106 = scmp.eq.s32.totalorder %s23, 1
      %p107 = por %p105, %p106
      %p108 = scmp.ne.s32.totalorder %s97, %s98
      %p109 = scmp.eq.s32.totalorder %s23, 0
      %p110 = por %p108, %p109
      %p111 = scmp.ne.s32.totalorder %s97, %s98
      %p112 = scmp.eq.s32.totalorder %s24, 1
      %p113 = por %p111, %p112
      %p115 = scmp.ne.s32.totalorder %s98, %s114
      %p116 = scmp.eq.s32.totalorder %s24, 0
      %p117 = por %p115, %p116
      %s118 = ssub.s32 %s25, %s37
      %s119 = ssub.s32 %s26, %s33
      %s120 = sor.u32 %s118, %s119
      %p121 = scmp.eq.s32.totalorder %s120, 0
      %s123 = sadd.s32 %s122, 1
      %s124 = scalar_select %p121, %s122, %s123
      %p127 = pneg %p121
      %p128 = scmp.eq.s32.totalorder %s18, 1
      %p129 = por %p127, %p128
      %p130 = scmp.ne.s32.totalorder %s122, %s125
      %p131 = scmp.eq.s32.totalorder %s18, 0
      %p132 = por %p130, %p131
      %p133 = scmp.ne.s32.totalorder %s122, %s125
      %p134 = scmp.eq.s32.totalorder %s23, 1
      %p135 = por %p133, %p134
      %p136 = scmp.ne.s32.totalorder %s125, %s126
      %p137 = scmp.eq.s32.totalorder %s23, 0
      %p138 = por %p136, %p137
      %p139 = scmp.ne.s32.totalorder %s125, %s126
      %p140 = scmp.eq.s32.totalorder %s24, 1
      %p141 = por %p139, %p140
      %p143 = scmp.ne.s32.totalorder %s126, %s142
      %p144 = scmp.eq.s32.totalorder %s24, 0
      %p145 = por %p143, %p144
      %p146 = scmp.le.s32.totalorder 1, %s18
      %p147 = scmp.lt.s32.totalorder %s18, 3
      %p148 = pnand %p146, %p147
      %p149 = pneg %p148
      // Predicated region
      $region9: #{tpu_custom_call.1} parent=5 // pred_check
        _
      $region10: #{tpu_custom_call.1} parent=5 // pred_check_branch
        %151 = sbr.rel (%p148) target = $region12
      $region11: #{tpu_custom_call.1} parent=5 // pred_region
        %s152 = ssub.s32 %s18, 1
        // Predicated region
        $region13: #{tpu_custom_call.1} parent=11 // pred_check
          %p153 = pneg %p110
        $region14: #{tpu_custom_call.1} parent=11 // pred_check_branch
          %155 = sbr.rel (%p153) target = $region16
        $region15: #{tpu_custom_call.1} parent=11 // pred_region
          %p156 = scmp.lt.s32.totalorder %s28, 0
          %s157 = scalar_select %p156, %s28, 0
          %s158 = scalar_lea.vmem %s2, %s157
        $region16: #{tpu_custom_call.1} parent=11 // pred_fallthru
          _
      $region12: #{tpu_custom_call.1} parent=5 // pred_fallthru
        _
      %p159 = scmp.lt.s32.totalorder %s18, 2
      // Predicated region
      $region17: #{tpu_custom_call.1} parent=5 // pred_check
        %p160 = pneg %p159
      $region18: #{tpu_custom_call.1} parent=5 // pred_check_branch
        %162 = sbr.rel (%p160) target = $region20
      $region19: #{tpu_custom_call.1} parent=5 // pred_region
        // Predicated region
        $region21: #{tpu_custom_call.1} parent=19 // pred_check
          %p163 = pneg %p50
        $region22: #{tpu_custom_call.1} parent=19 // pred_check_branch
          %165 = sbr.rel (%p163) target = $region24
        $region23: #{tpu_custom_call.1} parent=19 // pred_region
          #allocation10 [shape = 'u32[6]{0}', space=smem, size = 0x18, scoped, tag = 'DMA stride descriptor']
          %s166 = sand.u32 %s40, 1
          %s167 = scalar_lea.sflag [#allocation4], %s166
          %s168 = sand.u32 %s40, 1
          %s169 = smul.addr %s168, 64
          %s170 = scalar_lea.vmem [#allocation3], %s169
          %s171 = smul.u32 4, %s25
          %173 = vsyncadd %s167, 0
          %s174 = smul.addr %s171, 8
          %s175 = scalar_lea.hbm %s0, %s174
          %s177 = sshll.u32 1, 14
          %s178 = sxor.u32 4294967295, %s177
          %s180 = sld [smem:[#allocation0]]
          %s181 = sadd.s32 2, %s180
          %s183 = sshll.u32 7, 26
          %s184 = sxor.u32 4294967295, %s183
          %s185 = sand.u32 0, %s184
          %s186 = sshll.u32 %s181, 26
          %s187 = sor.u32 %s185, %s186
          %s188 = sshll.u32 %s175, 4
          %s189 = int_to_ptr.hbm [resolvable:$true] %s188
          %s190 = sshll.u32 %s170, 4
          %s191 = int_to_ptr.vmem [resolvable:$true] %s190
          %197 = sst [smem:[#allocation10]] 1024
          %s198 = scalar_lea.smem [#allocation10], 1
          %199 = sst [smem:[%s198]] 512
          %s200 = scalar_lea.smem [#allocation10], 2
          %201 = sst [smem:[%s200]] 4
          %s202 = scalar_lea.smem [#allocation10], 3
          %203 = sst [smem:[%s202]] 128
          %s204 = scalar_lea.smem [#allocation10], 4
          %205 = sst [smem:[%s204]] 128
          %s206 = scalar_lea.smem [#allocation10], 5
          %207 = sst [smem:[%s206]] 8
          %209 = dma.general %s189, 1024, %s191, %s167, [#allocation9], [#allocation10], %s187, 0
        $region24: #{tpu_custom_call.1} parent=19 // pred_fallthru
          _
        // Predicated region
        $region25: #{tpu_custom_call.1} parent=19 // pred_check
          %p210 = pneg %p78
        $region26: #{tpu_custom_call.1} parent=19 // pred_check_branch
          %212 = sbr.rel (%p210) target = $region28
        $region27: #{tpu_custom_call.1} parent=19 // pred_region
          %s213 = sand.u32 %s68, 1
          %s214 = scalar_lea.sflag [#allocation7], %s213
          %s215 = sand.u32 %s68, 1
          %s216 = smul.addr %s215, 1024
          %s217 = scalar_lea.vmem [#allocation6], %s216
          %s218 = smul.u32 32, %s25
          %220 = vsyncadd %s214, 0
          %s221 = smul.addr %s218, 8
          %s222 = sadd.s32 %s26, %s221
          %s223 = smul.addr %s222, 4
          %s224 = scalar_lea.hbm %s1, %s223
          %s225 = sshll.u32 %s224, 4
          %s226 = int_to_ptr.hbm [resolvable:$true] %s225
          %s227 = sshll.u32 %s217, 4
          %s228 = int_to_ptr.vmem [resolvable:$true] %s227
          %233 = dma.hbm_to_vmem [thread:$0]  %s226, 16384, %s228, %s214, 64, 64, 4
        $region28: #{tpu_custom_call.1} parent=19 // pred_fallthru
          _
      $region20: #{tpu_custom_call.1} parent=5 // pred_fallthru
        _
      %p234 = scmp.le.s32.totalorder 1, %s18
      %p235 = scmp.lt.s32.totalorder %s18, 3
      %p236 = pnand %p234, %p235
      %p237 = pneg %p236
      // Predicated region
      $region29: #{tpu_custom_call.1} parent=5 // pred_check
        _
      $region30: #{tpu_custom_call.1} parent=5 // pred_check_branch
        %239 = sbr.rel (%p236) target = $region32
      $region31: #{tpu_custom_call.1} parent=5 // pred_region
        %s240 = ssub.s32 %s18, 1
        %s241 = sand.u32 %s43, 1
        %s242 = scalar_lea.sflag [#allocation4], %s241
        %s243 = sand.u32 %s43, 1
        %s244 = smul.addr %s243, 64
        %s245 = scalar_lea.vmem [#allocation3], %s244
        // Predicated region
        $region33: #{tpu_custom_call.1} parent=31 // pred_check
          %p246 = pneg %p56
        $region34: #{tpu_custom_call.1} parent=31 // pred_check_branch
          %248 = sbr.rel (%p246) target = $region36
        $region35: #{tpu_custom_call.1} parent=31 // pred_region
          %250 = dma.done %s242, 1024
        $region36: #{tpu_custom_call.1} parent=31 // pred_fallthru
          _
        %s251 = sand.u32 %s71, 1
        %s252 = scalar_lea.sflag [#allocation7], %s251
        %s253 = sand.u32 %s71, 1
        %s254 = smul.addr %s253, 1024
        %s255 = scalar_lea.vmem [#allocation6], %s254
        // Predicated region
        $region37: #{tpu_custom_call.1} parent=31 // pred_check
          %p256 = pneg %p84
        $region38: #{tpu_custom_call.1} parent=31 // pred_check_branch
          %258 = sbr.rel (%p256) target = $region40
        $region39: #{tpu_custom_call.1} parent=31 // pred_region
          %260 = dma.done %s252, 16384
        $region40: #{tpu_custom_call.1} parent=31 // pred_fallthru
          _
        %s261 = sand.u32 %s43, 1
        %s262 = scalar_lea.sflag [#allocation4], %s261
        %s263 = sand.u32 %s43, 1
        %s264 = smul.addr %s263, 64
        %s265 = scalar_lea.vmem [#allocation3], %s264
        %p266 = pneg %p56
        %p267 = pneg %p53
        %s268 = sand.u32 %s71, 1
        %s269 = scalar_lea.sflag [#allocation7], %s268
        %s270 = sand.u32 %s71, 1
        %s271 = smul.addr %s270, 1024
        %s272 = scalar_lea.vmem [#allocation6], %s271
        %p273 = pneg %p84
        %p274 = pneg %p81
        %p275 = scmp.lt.s32.totalorder %s28, 0
        %s276 = scalar_select %p275, %s28, 0
        %s277 = scalar_lea.vmem %s2, %s276
        %p278 = pneg %p110
        %p279 = pneg %p107
        %p280 = pneg %p138
        %p281 = pneg %p135
        %s282 = sand.u32 %s125, 1
        %s283 = scalar_lea.sflag [#allocation5], %s282
        %s284 = sand.u32 %s125, 1
        %s285 = smul.addr %s284, 64
        %s286 = scalar_lea.vmem [#allocation8], %s285
        %s287 = smul.u32 4, %s27
        %s288 = smul.u32 32, %s27
        %p289 = scmp.lt.s32.totalorder %s28, 0
        %s290 = scalar_select %p289, %s28, 0
        %s291 = scalar_lea.vmem %s2, %s290
        %s292 = smul.u32 4, %s27
        %p294 = scmp.eq.s32.totalorder %s28, 0
        // Predicated region
        $region41: #{tpu_custom_call.1} parent=31 // pred_check
          %p295 = pneg %p294
        $region42: #{tpu_custom_call.1} parent=31 // pred_check_branch
          %297 = sbr.rel (%p295) target = $region44
        $region43: #{tpu_custom_call.1} parent=31 // pred_region
          %v298 = vld [vmem:[%s245] sm:$0xff]
          %v299 = vld [vmem:[%s245 + $0x8] sm:$0xff]
          %v300 = vld [vmem:[%s245 + $0x10] sm:$0xff]
          %v301 = vld [vmem:[%s245 + $0x18] sm:$0xff]
          %v302 = vpack.c.bf16 %v298, %v298
          %v303 = vpack.c.bf16 %v299, %v299
          %v304 = vpack.c.bf16 %v300, %v300
          %v305 = vpack.c.bf16 %v301, %v301
          %v310 = vrot.slane %v302, 3
          %v311 = vrot.slane %v303, 3
          %v312 = vrot.slane %v304, 3
          %v313 = vrot.slane %v305, 3
          %vm314 = vcmask 1040384
          %v317 = vsel %vm314, %v302, %v310
          %vm319 = vcmask 1041409
          %v320 = vsel %vm319, %v302, %v310
          %v322 = vrot.slane %v320, 1
          %vm323 = vcmask 1042434
          %v324 = vsel %vm323, %v302, %v310
          %v326 = vrot.slane %v324, 2
          %vm327 = vcmask 1043459
          %v328 = vsel %vm327, %v302, %v310
          %v330 = vrot.slane %v328, 3
          %v333 = vsel %vm314, %v303, %v311
          %v335 = vsel %vm319, %v303, %v311
          %v337 = vrot.slane %v335, 1
          %v338 = vsel %vm323, %v303, %v311
          %v340 = vrot.slane %v338, 2
          %v341 = vsel %vm327, %v303, %v311
          %v343 = vrot.slane %v341, 3
          %v346 = vsel %vm314, %v304, %v312
          %v348 = vsel %vm319, %v304, %v312
          %v350 = vrot.slane %v348, 1
          %v351 = vsel %vm323, %v304, %v312
          %v353 = vrot.slane %v351, 2
          %v354 = vsel %vm327, %v304, %v312
          %v356 = vrot.slane %v354, 3
          %v359 = vsel %vm314, %v305, %v313
          %v361 = vsel %vm319, %v305, %v313
          %v363 = vrot.slane %v361, 1
          %v364 = vsel %vm323, %v305, %v313
          %v366 = vrot.slane %v364, 2
          %v367 = vsel %vm327, %v305, %v313
          %v369 = vrot.slane %v367, 3
          %v370 = vunpack.i.l.s16 %v317
          %v371 = vunpack.i.h.s16 %v317
          %v372 = vunpack.i.l.s16 %v322
          %v373 = vunpack.i.h.s16 %v322
          %v374 = vunpack.i.l.s16 %v326
          %v375 = vunpack.i.h.s16 %v326
          %v376 = vunpack.i.l.s16 %v330
          %v377 = vunpack.i.h.s16 %v330
          %v378 = vunpack.i.l.s16 %v333
          %v379 = vunpack.i.h.s16 %v333
          %v380 = vunpack.i.l.s16 %v337
          %v381 = vunpack.i.h.s16 %v337
          %v382 = vunpack.i.l.s16 %v340
          %v383 = vunpack.i.h.s16 %v340
          %v384 = vunpack.i.l.s16 %v343
          %v385 = vunpack.i.h.s16 %v343
          %v386 = vunpack.i.l.s16 %v346
          %v387 = vunpack.i.h.s16 %v346
          %v388 = vunpack.i.l.s16 %v350
          %v389 = vunpack.i.h.s16 %v350
          %v390 = vunpack.i.l.s16 %v353
          %v391 = vunpack.i.h.s16 %v353
          %v392 = vunpack.i.l.s16 %v356
          %v393 = vunpack.i.h.s16 %v356
          %v394 = vunpack.i.l.s16 %v359
          %v395 = vunpack.i.h.s16 %v359
          %v396 = vunpack.i.l.s16 %v363
          %v397 = vunpack.i.h.s16 %v363
          %v398 = vunpack.i.l.s16 %v366
          %v399 = vunpack.i.h.s16 %v366
          %v400 = vunpack.i.l.s16 %v369
          %v401 = vunpack.i.h.s16 %v369
          %v402 = vpack.i.b16 %v370, %v370
          %v403 = vpack.i.b16 %v371, %v371
          %v404 = vpack.i.b16 %v372, %v372
          %v405 = vpack.i.b16 %v373, %v373
          %v406 = vpack.i.b16 %v374, %v374
          %v407 = vpack.i.b16 %v375, %v375
          %v408 = vpack.i.b16 %v376, %v376
          %v409 = vpack.i.b16 %v377, %v377
          %v410 = vpack.i.b16 %v378, %v378
          %v411 = vpack.i.b16 %v379, %v379
          %v412 = vpack.i.b16 %v380, %v380
          %v413 = vpack.i.b16 %v381, %v381
          %v414 = vpack.i.b16 %v382, %v382
          %v415 = vpack.i.b16 %v383, %v383
          %v416 = vpack.i.b16 %v384, %v384
          %v417 = vpack.i.b16 %v385, %v385
          %v418 = vpack.i.b16 %v386, %v386
          %v419 = vpack.i.b16 %v387, %v387
          %v420 = vpack.i.b16 %v388, %v388
          %v421 = vpack.i.b16 %v389, %v389
          %v422 = vpack.i.b16 %v390, %v390
          %v423 = vpack.i.b16 %v391, %v391
          %v424 = vpack.i.b16 %v392, %v392
          %v425 = vpack.i.b16 %v393, %v393
          %v426 = vpack.i.b16 %v394, %v394
          %v427 = vpack.i.b16 %v395, %v395
          %v428 = vpack.i.b16 %v396, %v396
          %v429 = vpack.i.b16 %v397, %v397
          %v430 = vpack.i.b16 %v398, %v398
          %v431 = vpack.i.b16 %v399, %v399
          %v432 = vpack.i.b16 %v400, %v400
          %v433 = vpack.i.b16 %v401, %v401
          %vm466 = vcmask 516096
          %vm467 = vsmask.f32 256
          %vm468 = vmand %vm466, %vm467
          %v469 = vld [vmem:[#allocation2] sm:$0x1]
          %v470 = vsel %vm468, %v402, %v469
          %471 = vst [vmem:[#allocation2] sm:$0x1] %v470
          %v472 = vld [vmem:[#allocation2 + $0x1] sm:$0x1]
          %v473 = vsel %vm468, %v403, %v472
          %474 = vst [vmem:[#allocation2 + $0x1] sm:$0x1] %v473
          %v475 = vld [vmem:[#allocation2 + $0x2] sm:$0x1]
          %v476 = vsel %vm468, %v404, %v475
          %477 = vst [vmem:[#allocation2 + $0x2] sm:$0x1] %v476
          %v478 = vld [vmem:[#allocation2 + $0x3] sm:$0x1]
          %v479 = vsel %vm468, %v405, %v478
          %480 = vst [vmem:[#allocation2 + $0x3] sm:$0x1] %v479
          %v481 = vld [vmem:[#allocation2 + $0x4] sm:$0x1]
          %v482 = vsel %vm468, %v406, %v481
          %483 = vst [vmem:[#allocation2 + $0x4] sm:$0x1] %v482
          %v484 = vld [vmem:[#allocation2 + $0x5] sm:$0x1]
          %v485 = vsel %vm468, %v407, %v484
          %486 = vst [vmem:[#allocation2 + $0x5] sm:$0x1] %v485
          %v487 = vld [vmem:[#allocation2 + $0x6] sm:$0x1]
          %v488 = vsel %vm468, %v408, %v487
          %489 = vst [vmem:[#allocation2 + $0x6] sm:$0x1] %v488
          %v490 = vld [vmem:[#allocation2 + $0x7] sm:$0x1]
          %v491 = vsel %vm468, %v409, %v490
          %492 = vst [vmem:[#allocation2 + $0x7] sm:$0x1] %v491
          %v493 = vld [vmem:[#allocation2 + $0x8] sm:$0x1]
          %v494 = vsel %vm468, %v410, %v493
          %495 = vst [vmem:[#allocation2 + $0x8] sm:$0x1] %v494
          %v496 = vld [vmem:[#allocation2 + $0x9] sm:$0x1]
          %v497 = vsel %vm468, %v411, %v496
          %498 = vst [vmem:[#allocation2 + $0x9] sm:$0x1] %v497
          %v499 = vld [vmem:[#allocation2 + $0xa] sm:$0x1]
          %v500 = vsel %vm468, %v412, %v499
          %501 = vst [vmem:[#allocation2 + $0xa] sm:$0x1] %v500
          %v502 = vld [vmem:[#allocation2 + $0xb] sm:$0x1]
          %v503 = vsel %vm468, %v413, %v502
          %504 = vst [vmem:[#allocation2 + $0xb] sm:$0x1] %v503
          %v505 = vld [vmem:[#allocation2 + $0xc] sm:$0x1]
          %v506 = vsel %vm468, %v414, %v505
          %507 = vst [vmem:[#allocation2 + $0xc] sm:$0x1] %v506
          %v508 = vld [vmem:[#allocation2 + $0xd] sm:$0x1]
          %v509 = vsel %vm468, %v415, %v508
          %510 = vst [vmem:[#allocation2 + $0xd] sm:$0x1] %v509
          %v511 = vld [vmem:[#allocation2 + $0xe] sm:$0x1]
          %v512 = vsel %vm468, %v416, %v511
          %513 = vst [vmem:[#allocation2 + $0xe] sm:$0x1] %v512
          %v514 = vld [vmem:[#allocation2 + $0xf] sm:$0x1]
          %v515 = vsel %vm468, %v417, %v514
          %516 = vst [vmem:[#allocation2 + $0xf] sm:$0x1] %v515
          %v517 = vld [vmem:[#allocation2 + $0x10] sm:$0x1]
          %v518 = vsel %vm468, %v418, %v517
          %519 = vst [vmem:[#allocation2 + $0x10] sm:$0x1] %v518
          %v520 = vld [vmem:[#allocation2 + $0x11] sm:$0x1]
          %v521 = vsel %vm468, %v419, %v520
          %522 = vst [vmem:[#allocation2 + $0x11] sm:$0x1] %v521
          %v523 = vld [vmem:[#allocation2 + $0x12] sm:$0x1]
          %v524 = vsel %vm468, %v420, %v523
          %525 = vst [vmem:[#allocation2 + $0x12] sm:$0x1] %v524
          %v526 = vld [vmem:[#allocation2 + $0x13] sm:$0x1]
          %v527 = vsel %vm468, %v421, %v526
          %528 = vst [vmem:[#allocation2 + $0x13] sm:$0x1] %v527
          %v529 = vld [vmem:[#allocation2 + $0x14] sm:$0x1]
          %v530 = vsel %vm468, %v422, %v529
          %531 = vst [vmem:[#allocation2 + $0x14] sm:$0x1] %v530
          %v532 = vld [vmem:[#allocation2 + $0x15] sm:$0x1]
          %v533 = vsel %vm468, %v423, %v532
          %534 = vst [vmem:[#allocation2 + $0x15] sm:$0x1] %v533
          %v535 = vld [vmem:[#allocation2 + $0x16] sm:$0x1]
          %v536 = vsel %vm468, %v424, %v535
          %537 = vst [vmem:[#allocation2 + $0x16] sm:$0x1] %v536
          %v538 = vld [vmem:[#allocation2 + $0x17] sm:$0x1]
          %v539 = vsel %vm468, %v425, %v538
          %540 = vst [vmem:[#allocation2 + $0x17] sm:$0x1] %v539
          %v541 = vld [vmem:[#allocation2 + $0x18] sm:$0x1]
          %v542 = vsel %vm468, %v426, %v541
          %543 = vst [vmem:[#allocation2 + $0x18] sm:$0x1] %v542
          %v544 = vld [vmem:[#allocation2 + $0x19] sm:$0x1]
          %v545 = vsel %vm468, %v427, %v544
          %546 = vst [vmem:[#allocation2 + $0x19] sm:$0x1] %v545
          %v547 = vld [vmem:[#allocation2 + $0x1a] sm:$0x1]
          %v548 = vsel %vm468, %v428, %v547
          %549 = vst [vmem:[#allocation2 + $0x1a] sm:$0x1] %v548
          %v550 = vld [vmem:[#allocation2 + $0x1b] sm:$0x1]
          %v551 = vsel %vm468, %v429, %v550
          %552 = vst [vmem:[#allocation2 + $0x1b] sm:$0x1] %v551
          %v553 = vld [vmem:[#allocation2 + $0x1c] sm:$0x1]
          %v554 = vsel %vm468, %v430, %v553
          %555 = vst [vmem:[#allocation2 + $0x1c] sm:$0x1] %v554
          %v556 = vld [vmem:[#allocation2 + $0x1d] sm:$0x1]
          %v557 = vsel %vm468, %v431, %v556
          %558 = vst [vmem:[#allocation2 + $0x1d] sm:$0x1] %v557
          %v559 = vld [vmem:[#allocation2 + $0x1e] sm:$0x1]
          %v560 = vsel %vm468, %v432, %v559
          %561 = vst [vmem:[#allocation2 + $0x1e] sm:$0x1] %v560
          %v562 = vld [vmem:[#allocation2 + $0x1f] sm:$0x1]
          %v563 = vsel %vm468, %v433, %v562
          %564 = vst [vmem:[#allocation2 + $0x1f] sm:$0x1] %v563
          %s565 = scalar_lea.vmem %s245, 32 [#allocation3]
          %v566 = vld [vmem:[%s565] sm:$0xff]
          %v567 = vld [vmem:[%s565 + $0x8] sm:$0xff]
          %v568 = vld [vmem:[%s565 + $0x10] sm:$0xff]
          %v569 = vld [vmem:[%s565 + $0x18] sm:$0xff]
          %v570 = vpack.c.bf16 %v566, %v566
          %v571 = vpack.c.bf16 %v567, %v567
          %v572 = vpack.c.bf16 %v568, %v568
          %v573 = vpack.c.bf16 %v569, %v569
          %v578 = vrot.slane %v570, 3
          %v579 = vrot.slane %v571, 3
          %v580 = vrot.slane %v572, 3
          %v581 = vrot.slane %v573, 3
          %v584 = vsel %vm314, %v570, %v578
          %v586 = vsel %vm319, %v570, %v578
          %v588 = vrot.slane %v586, 1
          %v589 = vsel %vm323, %v570, %v578
          %v591 = vrot.slane %v589, 2
          %v592 = vsel %vm327, %v570, %v578
          %v594 = vrot.slane %v592, 3
          %v597 = vsel %vm314, %v571, %v579
          %v599 = vsel %vm319, %v571, %v579
          %v601 = vrot.slane %v599, 1
          %v602 = vsel %vm323, %v571, %v579
          %v604 = vrot.slane %v602, 2
          %v605 = vsel %vm327, %v571, %v579
          %v607 = vrot.slane %v605, 3
          %v610 = vsel %vm314, %v572, %v580
          %v612 = vsel %vm319, %v572, %v580
          %v614 = vrot.slane %v612, 1
          %v615 = vsel %vm323, %v572, %v580
          %v617 = vrot.slane %v615, 2
          %v618 = vsel %vm327, %v572, %v580
          %v620 = vrot.slane %v618, 3
          %v623 = vsel %vm314, %v573, %v581
          %v625 = vsel %vm319, %v573, %v581
          %v627 = vrot.slane %v625, 1
          %v628 = vsel %vm323, %v573, %v581
          %v630 = vrot.slane %v628, 2
          %v631 = vsel %vm327, %v573, %v581
          %v633 = vrot.slane %v631, 3
          %v634 = vunpack.i.l.s16 %v584
          %v635 = vunpack.i.h.s16 %v584
          %v636 = vunpack.i.l.s16 %v588
          %v637 = vunpack.i.h.s16 %v588
          %v638 = vunpack.i.l.s16 %v591
          %v639 = vunpack.i.h.s16 %v591
          %v640 = vunpack.i.l.s16 %v594
          %v641 = vunpack.i.h.s16 %v594
          %v642 = vunpack.i.l.s16 %v597
          %v643 = vunpack.i.h.s16 %v597
          %v644 = vunpack.i.l.s16 %v601
          %v645 = vunpack.i.h.s16 %v601
          %v646 = vunpack.i.l.s16 %v604
          %v647 = vunpack.i.h.s16 %v604
          %v648 = vunpack.i.l.s16 %v607
          %v649 = vunpack.i.h.s16 %v607
          %v650 = vunpack.i.l.s16 %v610
          %v651 = vunpack.i.h.s16 %v610
          %v652 = vunpack.i.l.s16 %v614
          %v653 = vunpack.i.h.s16 %v614
          %v654 = vunpack.i.l.s16 %v617
          %v655 = vunpack.i.h.s16 %v617
          %v656 = vunpack.i.l.s16 %v620
          %v657 = vunpack.i.h.s16 %v620
          %v658 = vunpack.i.l.s16 %v623
          %v659 = vunpack.i.h.s16 %v623
          %v660 = vunpack.i.l.s16 %v627
          %v661 = vunpack.i.h.s16 %v627
          %v662 = vunpack.i.l.s16 %v630
          %v663 = vunpack.i.h.s16 %v630
          %v664 = vunpack.i.l.s16 %v633
          %v665 = vunpack.i.h.s16 %v633
          %v666 = vpack.i.b16 %v634, %v634
          %v667 = vpack.i.b16 %v635, %v635
          %v668 = vpack.i.b16 %v636, %v636
          %v669 = vpack.i.b16 %v637, %v637
          %v670 = vpack.i.b16 %v638, %v638
          %v671 = vpack.i.b16 %v639, %v639
          %v672 = vpack.i.b16 %v640, %v640
          %v673 = vpack.i.b16 %v641, %v641
          %v674 = vpack.i.b16 %v642, %v642
          %v675 = vpack.i.b16 %v643, %v643
          %v676 = vpack.i.b16 %v644, %v644
          %v677 = vpack.i.b16 %v645, %v645
          %v678 = vpack.i.b16 %v646, %v646
          %v679 = vpack.i.b16 %v647, %v647
          %v680 = vpack.i.b16 %v648, %v648
          %v681 = vpack.i.b16 %v649, %v649
          %v682 = vpack.i.b16 %v650, %v650
          %v683 = vpack.i.b16 %v651, %v651
          %v684 = vpack.i.b16 %v652, %v652
          %v685 = vpack.i.b16 %v653, %v653
          %v686 = vpack.i.b16 %v654, %v654
          %v687 = vpack.i.b16 %v655, %v655
          %v688 = vpack.i.b16 %v656, %v656
          %v689 = vpack.i.b16 %v657, %v657
          %v690 = vpack.i.b16 %v658, %v658
          %v691 = vpack.i.b16 %v659, %v659
          %v692 = vpack.i.b16 %v660, %v660
          %v693 = vpack.i.b16 %v661, %v661
          %v694 = vpack.i.b16 %v662, %v662
          %v695 = vpack.i.b16 %v663, %v663
          %v696 = vpack.i.b16 %v664, %v664
          %v697 = vpack.i.b16 %v665, %v665
          %vm730 = vsmask.f32 7938
          %vm731 = vmand %vm466, %vm730
          %v732 = vld [vmem:[#allocation2] sm:$0x1]
          %v733 = vsel %vm731, %v666, %v732
          %734 = vst [vmem:[#allocation2] sm:$0x1] %v733
          %v735 = vld [vmem:[#allocation2 + $0x1] sm:$0x1]
          %v736 = vsel %vm731, %v667, %v735
          %737 = vst [vmem:[#allocation2 + $0x1] sm:$0x1] %v736
          %v738 = vld [vmem:[#allocation2 + $0x2] sm:$0x1]
          %v739 = vsel %vm731, %v668, %v738
          %740 = vst [vmem:[#allocation2 + $0x2] sm:$0x1] %v739
          %v741 = vld [vmem:[#allocation2 + $0x3] sm:$0x1]
          %v742 = vsel %vm731, %v669, %v741
          %743 = vst [vmem:[#allocation2 + $0x3] sm:$0x1] %v742
          %v744 = vld [vmem:[#allocation2 + $0x4] sm:$0x1]
          %v745 = vsel %vm731, %v670, %v744
          %746 = vst [vmem:[#allocation2 + $0x4] sm:$0x1] %v745
          %v747 = vld [vmem:[#allocation2 + $0x5] sm:$0x1]
          %v748 = vsel %vm731, %v671, %v747
          %749 = vst [vmem:[#allocation2 + $0x5] sm:$0x1] %v748
          %v750 = vld [vmem:[#allocation2 + $0x6] sm:$0x1]
          %v751 = vsel %vm731, %v672, %v750
          %752 = vst [vmem:[#allocation2 + $0x6] sm:$0x1] %v751
          %v753 = vld [vmem:[#allocation2 + $0x7] sm:$0x1]
          %v754 = vsel %vm731, %v673, %v753
          %755 = vst [vmem:[#allocation2 + $0x7] sm:$0x1] %v754
          %v756 = vld [vmem:[#allocation2 + $0x8] sm:$0x1]
          %v757 = vsel %vm731, %v674, %v756
          %758 = vst [vmem:[#allocation2 + $0x8] sm:$0x1] %v757
          %v759 = vld [vmem:[#allocation2 + $0x9] sm:$0x1]
          %v760 = vsel %vm731, %v675, %v759
          %761 = vst [vmem:[#allocation2 + $0x9] sm:$0x1] %v760
          %v762 = vld [vmem:[#allocation2 + $0xa] sm:$0x1]
          %v763 = vsel %vm731, %v676, %v762
          %764 = vst [vmem:[#allocation2 + $0xa] sm:$0x1] %v763
          %v765 = vld [vmem:[#allocation2 + $0xb] sm:$0x1]
          %v766 = vsel %vm731, %v677, %v765
          %767 = vst [vmem:[#allocation2 + $0xb] sm:$0x1] %v766
          %v768 = vld [vmem:[#allocation2 + $0xc] sm:$0x1]
          %v769 = vsel %vm731, %v678, %v768
          %770 = vst [vmem:[#allocation2 + $0xc] sm:$0x1] %v769
          %v771 = vld [vmem:[#allocation2 + $0xd] sm:$0x1]
          %v772 = vsel %vm731, %v679, %v771
          %773 = vst [vmem:[#allocation2 + $0xd] sm:$0x1] %v772
          %v774 = vld [vmem:[#allocation2 + $0xe] sm:$0x1]
          %v775 = vsel %vm731, %v680, %v774
          %776 = vst [vmem:[#allocation2 + $0xe] sm:$0x1] %v775
          %v777 = vld [vmem:[#allocation2 + $0xf] sm:$0x1]
          %v778 = vsel %vm731, %v681, %v777
          %779 = vst [vmem:[#allocation2 + $0xf] sm:$0x1] %v778
          %v780 = vld [vmem:[#allocation2 + $0x10] sm:$0x1]
          %v781 = vsel %vm731, %v682, %v780
          %782 = vst [vmem:[#allocation2 + $0x10] sm:$0x1] %v781
          %v783 = vld [vmem:[#allocation2 + $0x11] sm:$0x1]
          %v784 = vsel %vm731, %v683, %v783
          %785 = vst [vmem:[#allocation2 + $0x11] sm:$0x1] %v784
          %v786 = vld [vmem:[#allocation2 + $0x12] sm:$0x1]
          %v787 = vsel %vm731, %v684, %v786
          %788 = vst [vmem:[#allocation2 + $0x12] sm:$0x1] %v787
          %v789 = vld [vmem:[#allocation2 + $0x13] sm:$0x1]
          %v790 = vsel %vm731, %v685, %v789
          %791 = vst [vmem:[#allocation2 + $0x13] sm:$0x1] %v790
          %v792 = vld [vmem:[#allocation2 + $0x14] sm:$0x1]
          %v793 = vsel %vm731, %v686, %v792
          %794 = vst [vmem:[#allocation2 + $0x14] sm:$0x1] %v793
          %v795 = vld [vmem:[#allocation2 + $0x15] sm:$0x1]
          %v796 = vsel %vm731, %v687, %v795
          %797 = vst [vmem:[#allocation2 + $0x15] sm:$0x1] %v796
          %v798 = vld [vmem:[#allocation2 + $0x16] sm:$0x1]
          %v799 = vsel %vm731, %v688, %v798
          %800 = vst [vmem:[#allocation2 + $0x16] sm:$0x1] %v799
          %v801 = vld [vmem:[#allocation2 + $0x17] sm:$0x1]
          %v802 = vsel %vm731, %v689, %v801
          %803 = vst [vmem:[#allocation2 + $0x17] sm:$0x1] %v802
          %v804 = vld [vmem:[#allocation2 + $0x18] sm:$0x1]
          %v805 = vsel %vm731, %v690, %v804
          %806 = vst [vmem:[#allocation2 + $0x18] sm:$0x1] %v805
          %v807 = vld [vmem:[#allocation2 + $0x19] sm:$0x1]
          %v808 = vsel %vm731, %v691, %v807
          %809 = vst [vmem:[#allocation2 + $0x19] sm:$0x1] %v808
          %v810 = vld [vmem:[#allocation2 + $0x1a] sm:$0x1]
          %v811 = vsel %vm731, %v692, %v810
          %812 = vst [vmem:[#allocation2 + $0x1a] sm:$0x1] %v811
          %v813 = vld [vmem:[#allocation2 + $0x1b] sm:$0x1]
          %v814 = vsel %vm731, %v693, %v813
          %815 = vst [vmem:[#allocation2 + $0x1b] sm:$0x1] %v814
          %v816 = vld [vmem:[#allocation2 + $0x1c] sm:$0x1]
          %v817 = vsel %vm731, %v694, %v816
          %818 = vst [vmem:[#allocation2 + $0x1c] sm:$0x1] %v817
          %v819 = vld [vmem:[#allocation2 + $0x1d] sm:$0x1]
          %v820 = vsel %vm731, %v695, %v819
          %821 = vst [vmem:[#allocation2 + $0x1d] sm:$0x1] %v820
          %v822 = vld [vmem:[#allocation2 + $0x1e] sm:$0x1]
          %v823 = vsel %vm731, %v696, %v822
          %824 = vst [vmem:[#allocation2 + $0x1e] sm:$0x1] %v823
          %v825 = vld [vmem:[#allocation2 + $0x1f] sm:$0x1]
          %v826 = vsel %vm731, %v697, %v825
          %827 = vst [vmem:[#allocation2 + $0x1f] sm:$0x1] %v826
        $region44: #{tpu_custom_call.1} parent=31 // pred_fallthru
          _
        %v828 = vld [vmem:[#allocation2] sm:$0x1]
        %v829 = vld [vmem:[#allocation2 + $0x1] sm:$0x1]
        %v830 = vld [vmem:[#allocation2 + $0x2] sm:$0x1]
        %v831 = vld [vmem:[#allocation2 + $0x3] sm:$0x1]
        %v832 = vld [vmem:[#allocation2 + $0x4] sm:$0x1]
        %v833 = vld [vmem:[#allocation2 + $0x5] sm:$0x1]
        %v834 = vld [vmem:[#allocation2 + $0x6] sm:$0x1]
        %v835 = vld [vmem:[#allocation2 + $0x7] sm:$0x1]
        %v836 = vld [vmem:[#allocation2 + $0x8] sm:$0x1]
        %v837 = vld [vmem:[#allocation2 + $0x9] sm:$0x1]
        %v838 = vld [vmem:[#allocation2 + $0xa] sm:$0x1]
        %v839 = vld [vmem:[#allocation2 + $0xb] sm:$0x1]
        %v840 = vld [vmem:[#allocation2 + $0xc] sm:$0x1]
        %v841 = vld [vmem:[#allocation2 + $0xd] sm:$0x1]
        %v842 = vld [vmem:[#allocation2 + $0xe] sm:$0x1]
        %v843 = vld [vmem:[#allocation2 + $0xf] sm:$0x1]
        %v844 = vld [vmem:[#allocation2 + $0x10] sm:$0x1]
        %v845 = vld [vmem:[#allocation2 + $0x11] sm:$0x1]
        %v846 = vld [vmem:[#allocation2 + $0x12] sm:$0x1]
        %v847 = vld [vmem:[#allocation2 + $0x13] sm:$0x1]
        %v848 = vld [vmem:[#allocation2 + $0x14] sm:$0x1]
        %v849 = vld [vmem:[#allocation2 + $0x15] sm:$0x1]
        %v850 = vld [vmem:[#allocation2 + $0x16] sm:$0x1]
        %v851 = vld [vmem:[#allocation2 + $0x17] sm:$0x1]
        %v852 = vld [vmem:[#allocation2 + $0x18] sm:$0x1]
        %v853 = vld [vmem:[#allocation2 + $0x19] sm:$0x1]
        %v854 = vld [vmem:[#allocation2 + $0x1a] sm:$0x1]
        %v855 = vld [vmem:[#allocation2 + $0x1b] sm:$0x1]
        %v856 = vld [vmem:[#allocation2 + $0x1c] sm:$0x1]
        %v857 = vld [vmem:[#allocation2 + $0x1d] sm:$0x1]
        %v858 = vld [vmem:[#allocation2 + $0x1e] sm:$0x1]
        %v859 = vld [vmem:[#allocation2 + $0x1f] sm:$0x1]
        %v860 = vld [vmem:[%s255] sm:$0xf]
        %v861 = vld [vmem:[%s255 + $0x4] sm:$0xf]
        %v862 = vld [vmem:[%s255 + $0x8] sm:$0xf]
        %v863 = vld [vmem:[%s255 + $0xc] sm:$0xf]
        %v864 = vld [vmem:[%s255 + $0x10] sm:$0xf]
        %v865 = vld [vmem:[%s255 + $0x14] sm:$0xf]
        %v866 = vld [vmem:[%s255 + $0x18] sm:$0xf]
        %v867 = vld [vmem:[%s255 + $0x1c] sm:$0xf]
        %v868 = vld [vmem:[%s255 + $0x20] sm:$0xf]
        %v869 = vld [vmem:[%s255 + $0x24] sm:$0xf]
        %v870 = vld [vmem:[%s255 + $0x28] sm:$0xf]
        %v871 = vld [vmem:[%s255 + $0x2c] sm:$0xf]
        %v872 = vld [vmem:[%s255 + $0x30] sm:$0xf]
        %v873 = vld [vmem:[%s255 + $0x34] sm:$0xf]
        %v874 = vld [vmem:[%s255 + $0x38] sm:$0xf]
        %v875 = vld [vmem:[%s255 + $0x3c] sm:$0xf]
        %v876 = vld [vmem:[%s255 + $0x40] sm:$0xf]
        %v877 = vld [vmem:[%s255 + $0x44] sm:$0xf]
        %v878 = vld [vmem:[%s255 + $0x48] sm:$0xf]
        %v879 = vld [vmem:[%s255 + $0x4c] sm:$0xf]
        %v880 = vld [vmem:[%s255 + $0x50] sm:$0xf]
        %v881 = vld [vmem:[%s255 + $0x54] sm:$0xf]
        %v882 = vld [vmem:[%s255 + $0x58] sm:$0xf]
        %v883 = vld [vmem:[%s255 + $0x5c] sm:$0xf]
        %v884 = vld [vmem:[%s255 + $0x60] sm:$0xf]
        %v885 = vld [vmem:[%s255 + $0x64] sm:$0xf]
        %v886 = vld [vmem:[%s255 + $0x68] sm:$0xf]
        %v887 = vld [vmem:[%s255 + $0x6c] sm:$0xf]
        %v888 = vld [vmem:[%s255 + $0x70] sm:$0xf]
        %v889 = vld [vmem:[%s255 + $0x74] sm:$0xf]
        %v890 = vld [vmem:[%s255 + $0x78] sm:$0xf]
        %v891 = vld [vmem:[%s255 + $0x7c] sm:$0xf]
        %v892 = vld [vmem:[%s255 + $0x80] sm:$0xf]
        %v893 = vld [vmem:[%s255 + $0x84] sm:$0xf]
        %v894 = vld [vmem:[%s255 + $0x88] sm:$0xf]
        %v895 = vld [vmem:[%s255 + $0x8c] sm:$0xf]
        %v896 = vld [vmem:[%s255 + $0x90] sm:$0xf]
        %v897 = vld [vmem:[%s255 + $0x94] sm:$0xf]
        %v898 = vld [vmem:[%s255 + $0x98] sm:$0xf]
        %v899 = vld [vmem:[%s255 + $0x9c] sm:$0xf]
        %v900 = vld [vmem:[%s255 + $0xa0] sm:$0xf]
        %v901 = vld [vmem:[%s255 + $0xa4] sm:$0xf]
        %v902 = vld [vmem:[%s255 + $0xa8] sm:$0xf]
        %v903 = vld [vmem:[%s255 + $0xac] sm:$0xf]
        %v904 = vld [vmem:[%s255 + $0xb0] sm:$0xf]
        %v905 = vld [vmem:[%s255 + $0xb4] sm:$0xf]
        %v906 = vld [vmem:[%s255 + $0xb8] sm:$0xf]
        %v907 = vld [vmem:[%s255 + $0xbc] sm:$0xf]
        %v908 = vld [vmem:[%s255 + $0xc0] sm:$0xf]
        %v909 = vld [vmem:[%s255 + $0xc4] sm:$0xf]
        %v910 = vld [vmem:[%s255 + $0xc8] sm:$0xf]
        %v911 = vld [vmem:[%s255 + $0xcc] sm:$0xf]
        %v912 = vld [vmem:[%s255 + $0xd0] sm:$0xf]
        %v913 = vld [vmem:[%s255 + $0xd4] sm:$0xf]
        %v914 = vld [vmem:[%s255 + $0xd8] sm:$0xf]
        %v915 = vld [vmem:[%s255 + $0xdc] sm:$0xf]
        %v916 = vld [vmem:[%s255 + $0xe0] sm:$0xf]
        %v917 = vld [vmem:[%s255 + $0xe4] sm:$0xf]
        %v918 = vld [vmem:[%s255 + $0xe8] sm:$0xf]
        %v919 = vld [vmem:[%s255 + $0xec] sm:$0xf]
        %v920 = vld [vmem:[%s255 + $0xf0] sm:$0xf]
        %v921 = vld [vmem:[%s255 + $0xf4] sm:$0xf]
        %v922 = vld [vmem:[%s255 + $0xf8] sm:$0xf]
        %v923 = vld [vmem:[%s255 + $0xfc] sm:$0xf]
        %v924 = vld [vmem:[%s255 + $0x100] sm:$0xf]
        %v925 = vld [vmem:[%s255 + $0x104] sm:$0xf]
        %v926 = vld [vmem:[%s255 + $0x108] sm:$0xf]
        %v927 = vld [vmem:[%s255 + $0x10c] sm:$0xf]
        %v928 = vld [vmem:[%s255 + $0x110] sm:$0xf]
        %v929 = vld [vmem:[%s255 + $0x114] sm:$0xf]
        %v930 = vld [vmem:[%s255 + $0x118] sm:$0xf]
        %v931 = vld [vmem:[%s255 + $0x11c] sm:$0xf]
        %v932 = vld [vmem:[%s255 + $0x120] sm:$0xf]
        %v933 = vld [vmem:[%s255 + $0x124] sm:$0xf]
        %v934 = vld [vmem:[%s255 + $0x128] sm:$0xf]
        %v935 = vld [vmem:[%s255 + $0x12c] sm:$0xf]
        %v936 = vld [vmem:[%s255 + $0x130] sm:$0xf]
        %v937 = vld [vmem:[%s255 + $0x134] sm:$0xf]
        %v938 = vld [vmem:[%s255 + $0x138] sm:$0xf]
        %v939 = vld [vmem:[%s255 + $0x13c] sm:$0xf]
        %v940 = vld [vmem:[%s255 + $0x140] sm:$0xf]
        %v941 = vld [vmem:[%s255 + $0x144] sm:$0xf]
        %v942 = vld [vmem:[%s255 + $0x148] sm:$0xf]
        %v943 = vld [vmem:[%s255 + $0x14c] sm:$0xf]
        %v944 = vld [vmem:[%s255 + $0x150] sm:$0xf]
        %v945 = vld [vmem:[%s255 + $0x154] sm:$0xf]
        %v946 = vld [vmem:[%s255 + $0x158] sm:$0xf]
        %v947 = vld [vmem:[%s255 + $0x15c] sm:$0xf]
        %v948 = vld [vmem:[%s255 + $0x160] sm:$0xf]
        %v949 = vld [vmem:[%s255 + $0x164] sm:$0xf]
        %v950 = vld [vmem:[%s255 + $0x168] sm:$0xf]
        %v951 = vld [vmem:[%s255 + $0x16c] sm:$0xf]
        %v952 = vld [vmem:[%s255 + $0x170] sm:$0xf]
        %v953 = vld [vmem:[%s255 + $0x174] sm:$0xf]
        %v954 = vld [vmem:[%s255 + $0x178] sm:$0xf]
        %v955 = vld [vmem:[%s255 + $0x17c] sm:$0xf]
        %v956 = vld [vmem:[%s255 + $0x180] sm:$0xf]
        %v957 = vld [vmem:[%s255 + $0x184] sm:$0xf]
        %v958 = vld [vmem:[%s255 + $0x188] sm:$0xf]
        %v959 = vld [vmem:[%s255 + $0x18c] sm:$0xf]
        %v960 = vld [vmem:[%s255 + $0x190] sm:$0xf]
        %v961 = vld [vmem:[%s255 + $0x194] sm:$0xf]
        %v962 = vld [vmem:[%s255 + $0x198] sm:$0xf]
        %v963 = vld [vmem:[%s255 + $0x19c] sm:$0xf]
        %v964 = vld [vmem:[%s255 + $0x1a0] sm:$0xf]
        %v965 = vld [vmem:[%s255 + $0x1a4] sm:$0xf]
        %v966 = vld [vmem:[%s255 + $0x1a8] sm:$0xf]
        %v967 = vld [vmem:[%s255 + $0x1ac] sm:$0xf]
        %v968 = vld [vmem:[%s255 + $0x1b0] sm:$0xf]
        %v969 = vld [vmem:[%s255 + $0x1b4] sm:$0xf]
        %v970 = vld [vmem:[%s255 + $0x1b8] sm:$0xf]
        %v971 = vld [vmem:[%s255 + $0x1bc] sm:$0xf]
        %v972 = vld [vmem:[%s255 + $0x1c0] sm:$0xf]
        %v973 = vld [vmem:[%s255 + $0x1c4] sm:$0xf]
        %v974 = vld [vmem:[%s255 + $0x1c8] sm:$0xf]
        %v975 = vld [vmem:[%s255 + $0x1cc] sm:$0xf]
        %v976 = vld [vmem:[%s255 + $0x1d0] sm:$0xf]
        %v977 = vld [vmem:[%s255 + $0x1d4] sm:$0xf]
        %v978 = vld [vmem:[%s255 + $0x1d8] sm:$0xf]
        %v979 = vld [vmem:[%s255 + $0x1dc] sm:$0xf]
        %v980 = vld [vmem:[%s255 + $0x1e0] sm:$0xf]
        %v981 = vld [vmem:[%s255 + $0x1e4] sm:$0xf]
        %v982 = vld [vmem:[%s255 + $0x1e8] sm:$0xf]
        %v983 = vld [vmem:[%s255 + $0x1ec] sm:$0xf]
        %v984 = vld [vmem:[%s255 + $0x1f0] sm:$0xf]
        %v985 = vld [vmem:[%s255 + $0x1f4] sm:$0xf]
        %v986 = vld [vmem:[%s255 + $0x1f8] sm:$0xf]
        %v987 = vld [vmem:[%s255 + $0x1fc] sm:$0xf]
        %v988 = vld [vmem:[%s255 + $0x200] sm:$0xf]
        %v989 = vld [vmem:[%s255 + $0x204] sm:$0xf]
        %v990 = vld [vmem:[%s255 + $0x208] sm:$0xf]
        %v991 = vld [vmem:[%s255 + $0x20c] sm:$0xf]
        %v992 = vld [vmem:[%s255 + $0x210] sm:$0xf]
        %v993 = vld [vmem:[%s255 + $0x214] sm:$0xf]
        %v994 = vld [vmem:[%s255 + $0x218] sm:$0xf]
        %v995 = vld [vmem:[%s255 + $0x21c] sm:$0xf]
        %v996 = vld [vmem:[%s255 + $0x220] sm:$0xf]
        %v997 = vld [vmem:[%s255 + $0x224] sm:$0xf]
        %v998 = vld [vmem:[%s255 + $0x228] sm:$0xf]
        %v999 = vld [vmem:[%s255 + $0x22c] sm:$0xf]
        %v1000 = vld [vmem:[%s255 + $0x230] sm:$0xf]
        %v1001 = vld [vmem:[%s255 + $0x234] sm:$0xf]
        %v1002 = vld [vmem:[%s255 + $0x238] sm:$0xf]
        %v1003 = vld [vmem:[%s255 + $0x23c] sm:$0xf]
        %v1004 = vld [vmem:[%s255 + $0x240] sm:$0xf]
        %v1005 = vld [vmem:[%s255 + $0x244] sm:$0xf]
        %v1006 = vld [vmem:[%s255 + $0x248] sm:$0xf]
        %v1007 = vld [vmem:[%s255 + $0x24c] sm:$0xf]
        %v1008 = vld [vmem:[%s255 + $0x250] sm:$0xf]
        %v1009 = vld [vmem:[%s255 + $0x254] sm:$0xf]
        %v1010 = vld [vmem:[%s255 + $0x258] sm:$0xf]
        %v1011 = vld [vmem:[%s255 + $0x25c] sm:$0xf]
        %v1012 = vld [vmem:[%s255 + $0x260] sm:$0xf]
        %v1013 = vld [vmem:[%s255 + $0x264] sm:$0xf]
        %v1014 = vld [vmem:[%s255 + $0x268] sm:$0xf]
        %v1015 = vld [vmem:[%s255 + $0x26c] sm:$0xf]
        %v1016 = vld [vmem:[%s255 + $0x270] sm:$0xf]
        %v1017 = vld [vmem:[%s255 + $0x274] sm:$0xf]
        %v1018 = vld [vmem:[%s255 + $0x278] sm:$0xf]
        %v1019 = vld [vmem:[%s255 + $0x27c] sm:$0xf]
        %v1020 = vld [vmem:[%s255 + $0x280] sm:$0xf]
        %v1021 = vld [vmem:[%s255 + $0x284] sm:$0xf]
        %v1022 = vld [vmem:[%s255 + $0x288] sm:$0xf]
        %v1023 = vld [vmem:[%s255 + $0x28c] sm:$0xf]
        %v1024 = vld [vmem:[%s255 + $0x290] sm:$0xf]
        %v1025 = vld [vmem:[%s255 + $0x294] sm:$0xf]
        %v1026 = vld [vmem:[%s255 + $0x298] sm:$0xf]
        %v1027 = vld [vmem:[%s255 + $0x29c] sm:$0xf]
        %v1028 = vld [vmem:[%s255 + $0x2a0] sm:$0xf]
        %v1029 = vld [vmem:[%s255 + $0x2a4] sm:$0xf]
        %v1030 = vld [vmem:[%s255 + $0x2a8] sm:$0xf]
        %v1031 = vld [vmem:[%s255 + $0x2ac] sm:$0xf]
        %v1032 = vld [vmem:[%s255 + $0x2b0] sm:$0xf]
        %v1033 = vld [vmem:[%s255 + $0x2b4] sm:$0xf]
        %v1034 = vld [vmem:[%s255 + $0x2b8] sm:$0xf]
        %v1035 = vld [vmem:[%s255 + $0x2bc] sm:$0xf]
        %v1036 = vld [vmem:[%s255 + $0x2c0] sm:$0xf]
        %v1037 = vld [vmem:[%s255 + $0x2c4] sm:$0xf]
        %v1038 = vld [vmem:[%s255 + $0x2c8] sm:$0xf]
        %v1039 = vld [vmem:[%s255 + $0x2cc] sm:$0xf]
        %v1040 = vld [vmem:[%s255 + $0x2d0] sm:$0xf]
        %v1041 = vld [vmem:[%s255 + $0x2d4] sm:$0xf]
        %v1042 = vld [vmem:[%s255 + $0x2d8] sm:$0xf]
        %v1043 = vld [vmem:[%s255 + $0x2dc] sm:$0xf]
        %v1044 = vld [vmem:[%s255 + $0x2e0] sm:$0xf]
        %v1045 = vld [vmem:[%s255 + $0x2e4] sm:$0xf]
        %v1046 = vld [vmem:[%s255 + $0x2e8] sm:$0xf]
        %v1047 = vld [vmem:[%s255 + $0x2ec] sm:$0xf]
        %v1048 = vld [vmem:[%s255 + $0x2f0] sm:$0xf]
        %v1049 = vld [vmem:[%s255 + $0x2f4] sm:$0xf]
        %v1050 = vld [vmem:[%s255 + $0x2f8] sm:$0xf]
        %v1051 = vld [vmem:[%s255 + $0x2fc] sm:$0xf]
        %v1052 = vld [vmem:[%s255 + $0x300] sm:$0xf]
        %v1053 = vld [vmem:[%s255 + $0x304] sm:$0xf]
        %v1054 = vld [vmem:[%s255 + $0x308] sm:$0xf]
        %v1055 = vld [vmem:[%s255 + $0x30c] sm:$0xf]
        %v1056 = vld [vmem:[%s255 + $0x310] sm:$0xf]
        %v1057 = vld [vmem:[%s255 + $0x314] sm:$0xf]
        %v1058 = vld [vmem:[%s255 + $0x318] sm:$0xf]
        %v1059 = vld [vmem:[%s255 + $0x31c] sm:$0xf]
        %v1060 = vld [vmem:[%s255 + $0x320] sm:$0xf]
        %v1061 = vld [vmem:[%s255 + $0x324] sm:$0xf]
        %v1062 = vld [vmem:[%s255 + $0x328] sm:$0xf]
        %v1063 = vld [vmem:[%s255 + $0x32c] sm:$0xf]
        %v1064 = vld [vmem:[%s255 + $0x330] sm:$0xf]
        %v1065 = vld [vmem:[%s255 + $0x334] sm:$0xf]
        %v1066 = vld [vmem:[%s255 + $0x338] sm:$0xf]
        %v1067 = vld [vmem:[%s255 + $0x33c] sm:$0xf]
        %v1068 = vld [vmem:[%s255 + $0x340] sm:$0xf]
        %v1069 = vld [vmem:[%s255 + $0x344] sm:$0xf]
        %v1070 = vld [vmem:[%s255 + $0x348] sm:$0xf]
        %v1071 = vld [vmem:[%s255 + $0x34c] sm:$0xf]
        %v1072 = vld [vmem:[%s255 + $0x350] sm:$0xf]
        %v1073 = vld [vmem:[%s255 + $0x354] sm:$0xf]
        %v1074 = vld [vmem:[%s255 + $0x358] sm:$0xf]
        %v1075 = vld [vmem:[%s255 + $0x35c] sm:$0xf]
        %v1076 = vld [vmem:[%s255 + $0x360] sm:$0xf]
        %v1077 = vld [vmem:[%s255 + $0x364] sm:$0xf]
        %v1078 = vld [vmem:[%s255 + $0x368] sm:$0xf]
        %v1079 = vld [vmem:[%s255 + $0x36c] sm:$0xf]
        %v1080 = vld [vmem:[%s255 + $0x370] sm:$0xf]
        %v1081 = vld [vmem:[%s255 + $0x374] sm:$0xf]
        %v1082 = vld [vmem:[%s255 + $0x378] sm:$0xf]
        %v1083 = vld [vmem:[%s255 + $0x37c] sm:$0xf]
        %v1084 = vld [vmem:[%s255 + $0x380] sm:$0xf]
        %v1085 = vld [vmem:[%s255 + $0x384] sm:$0xf]
        %v1086 = vld [vmem:[%s255 + $0x388] sm:$0xf]
        %v1087 = vld [vmem:[%s255 + $0x38c] sm:$0xf]
        %v1088 = vld [vmem:[%s255 + $0x390] sm:$0xf]
        %v1089 = vld [vmem:[%s255 + $0x394] sm:$0xf]
        %v1090 = vld [vmem:[%s255 + $0x398] sm:$0xf]
        %v1091 = vld [vmem:[%s255 + $0x39c] sm:$0xf]
        %v1092 = vld [vmem:[%s255 + $0x3a0] sm:$0xf]
        %v1093 = vld [vmem:[%s255 + $0x3a4] sm:$0xf]
        %v1094 = vld [vmem:[%s255 + $0x3a8] sm:$0xf]
        %v1095 = vld [vmem:[%s255 + $0x3ac] sm:$0xf]
        %v1096 = vld [vmem:[%s255 + $0x3b0] sm:$0xf]
        %v1097 = vld [vmem:[%s255 + $0x3b4] sm:$0xf]
        %v1098 = vld [vmem:[%s255 + $0x3b8] sm:$0xf]
        %v1099 = vld [vmem:[%s255 + $0x3bc] sm:$0xf]
        %v1100 = vld [vmem:[%s255 + $0x3c0] sm:$0xf]
        %v1101 = vld [vmem:[%s255 + $0x3c4] sm:$0xf]
        %v1102 = vld [vmem:[%s255 + $0x3c8] sm:$0xf]
        %v1103 = vld [vmem:[%s255 + $0x3cc] sm:$0xf]
        %v1104 = vld [vmem:[%s255 + $0x3d0] sm:$0xf]
        %v1105 = vld [vmem:[%s255 + $0x3d4] sm:$0xf]
        %v1106 = vld [vmem:[%s255 + $0x3d8] sm:$0xf]
        %v1107 = vld [vmem:[%s255 + $0x3dc] sm:$0xf]
        %v1108 = vld [vmem:[%s255 + $0x3e0] sm:$0xf]
        %v1109 = vld [vmem:[%s255 + $0x3e4] sm:$0xf]
        %v1110 = vld [vmem:[%s255 + $0x3e8] sm:$0xf]
        %v1111 = vld [vmem:[%s255 + $0x3ec] sm:$0xf]
        %v1112 = vld [vmem:[%s255 + $0x3f0] sm:$0xf]
        %v1113 = vld [vmem:[%s255 + $0x3f4] sm:$0xf]
        %v1114 = vld [vmem:[%s255 + $0x3f8] sm:$0xf]
        %v1115 = vld [vmem:[%s255 + $0x3fc] sm:$0xf]
        %v1124 = vunpack.c.l.b16 %v860
        %v1125 = vunpack.c.l.b16 %v861
        %v1126 = vunpack.c.l.b16 %v862
        %v1127 = vunpack.c.l.b16 %v863
        %v1128 = vunpack.c.l.b16 %v864
        %v1129 = vunpack.c.l.b16 %v865
        %v1130 = vunpack.c.l.b16 %v866
        %v1131 = vunpack.c.l.b16 %v867
        %v1132 = vpack.c.b16 %v1125, %v1124
        %v1133 = vpack.c.b16 %v1127, %v1126
        %v1134 = vpack.c.b16 %v1129, %v1128
        %v1135 = vpack.c.b16 %v1131, %v1130
        %vm1140 = vcmask 523264
        %v1142 = vsel %vm1140, %v828, 0
        %1144 = vmatpush.bf16.msra.mxu0 0
        %1145 = vmatpush.bf16.msra.mxu0 0
        %1146 = vmatpush.bf16.msra.mxu0 0
        %1147 = vmatpush.bf16.msra.mxu0 0
        %1148 = vmatpush.bf16.msra.mxu0 %v1135
        %1149 = vmatpush.bf16.msra.mxu0 %v1134
        %1150 = vmatpush.bf16.msra.mxu0 %v1133
        %1151 = vmatpush.bf16.msra.mxu0 %v1132
        %1152 = vmatmul.bf16.gmra.mxu0 %v1142
        %v1153 = vpop.f32.mrf.mxu0
        %v1154 = vadd.f32 0.0, %v1153
        %v1155 = vpop.f32.mrf.mxu0
        %1156 = vdwg.mxu0
        %v1165 = vunpack.c.l.b16 %v868
        %v1166 = vunpack.c.l.b16 %v869
        %v1167 = vunpack.c.l.b16 %v870
        %v1168 = vunpack.c.l.b16 %v871
        %v1169 = vunpack.c.l.b16 %v872
        %v1170 = vunpack.c.l.b16 %v873
        %v1171 = vunpack.c.l.b16 %v874
        %v1172 = vunpack.c.l.b16 %v875
        %v1173 = vpack.c.b16 %v1166, %v1165
        %v1174 = vpack.c.b16 %v1168, %v1167
        %v1175 = vpack.c.b16 %v1170, %v1169
        %v1176 = vpack.c.b16 %v1172, %v1171
        %v1182 = vsel %vm1140, %v829, 0
        %1184 = vmatpush.bf16.msra.mxu0 0
        %1185 = vmatpush.bf16.msra.mxu0 0
        %1186 = vmatpush.bf16.msra.mxu0 0
        %1187 = vmatpush.bf16.msra.mxu0 0
        %1188 = vmatpush.bf16.msra.mxu0 %v1176
        %1189 = vmatpush.bf16.msra.mxu0 %v1175
        %1190 = vmatpush.bf16.msra.mxu0 %v1174
        %1191 = vmatpush.bf16.msra.mxu0 %v1173
        %1192 = vmatmul.bf16.gmra.mxu0 %v1182
        %v1193 = vpop.f32.mrf.mxu0
        %v1194 = vadd.f32 0.0, %v1193
        %v1195 = vpop.f32.mrf.mxu0
        %1196 = vdwg.mxu0
        %v1205 = vunpack.c.l.b16 %v876
        %v1206 = vunpack.c.l.b16 %v877
        %v1207 = vunpack.c.l.b16 %v878
        %v1208 = vunpack.c.l.b16 %v879
        %v1209 = vunpack.c.l.b16 %v880
        %v1210 = vunpack.c.l.b16 %v881
        %v1211 = vunpack.c.l.b16 %v882
        %v1212 = vunpack.c.l.b16 %v883
        %v1213 = vpack.c.b16 %v1206, %v1205
        %v1214 = vpack.c.b16 %v1208, %v1207
        %v1215 = vpack.c.b16 %v1210, %v1209
        %v1216 = vpack.c.b16 %v1212, %v1211
        %v1222 = vsel %vm1140, %v830, 0
        %1224 = vmatpush.bf16.msra.mxu0 0
        %1225 = vmatpush.bf16.msra.mxu0 0
        %1226 = vmatpush.bf16.msra.mxu0 0
        %1227 = vmatpush.bf16.msra.mxu0 0
        %1228 = vmatpush.bf16.msra.mxu0 %v1216
        %1229 = vmatpush.bf16.msra.mxu0 %v1215
        %1230 = vmatpush.bf16.msra.mxu0 %v1214
        %1231 = vmatpush.bf16.msra.mxu0 %v1213
        %1232 = vmatmul.bf16.gmra.mxu0 %v1222
        %v1233 = vpop.f32.mrf.mxu0
        %v1234 = vadd.f32 0.0, %v1233
        %v1235 = vpop.f32.mrf.mxu0
        %1236 = vdwg.mxu0
        %v1245 = vunpack.c.l.b16 %v884
        %v1246 = vunpack.c.l.b16 %v885
        %v1247 = vunpack.c.l.b16 %v886
        %v1248 = vunpack.c.l.b16 %v887
        %v1249 = vunpack.c.l.b16 %v888
        %v1250 = vunpack.c.l.b16 %v889
        %v1251 = vunpack.c.l.b16 %v890
        %v1252 = vunpack.c.l.b16 %v891
        %v1253 = vpack.c.b16 %v1246, %v1245
        %v1254 = vpack.c.b16 %v1248, %v1247
        %v1255 = vpack.c.b16 %v1250, %v1249
        %v1256 = vpack.c.b16 %v1252, %v1251
        %v1262 = vsel %vm1140, %v831, 0
        %1264 = vmatpush.bf16.msra.mxu0 0
        %1265 = vmatpush.bf16.msra.mxu0 0
        %1266 = vmatpush.bf16.msra.mxu0 0
        %1267 = vmatpush.bf16.msra.mxu0 0
        %1268 = vmatpush.bf16.msra.mxu0 %v1256
        %1269 = vmatpush.bf16.msra.mxu0 %v1255
        %1270 = vmatpush.bf16.msra.mxu0 %v1254
        %1271 = vmatpush.bf16.msra.mxu0 %v1253
        %1272 = vmatmul.bf16.gmra.mxu0 %v1262
        %v1273 = vpop.f32.mrf.mxu0
        %v1274 = vadd.f32 0.0, %v1273
        %v1275 = vpop.f32.mrf.mxu0
        %1276 = vdwg.mxu0
        %v1285 = vunpack.c.l.b16 %v892
        %v1286 = vunpack.c.l.b16 %v893
        %v1287 = vunpack.c.l.b16 %v894
        %v1288 = vunpack.c.l.b16 %v895
        %v1289 = vunpack.c.l.b16 %v896
        %v1290 = vunpack.c.l.b16 %v897
        %v1291 = vunpack.c.l.b16 %v898
        %v1292 = vunpack.c.l.b16 %v899
        %v1293 = vpack.c.b16 %v1286, %v1285
        %v1294 = vpack.c.b16 %v1288, %v1287
        %v1295 = vpack.c.b16 %v1290, %v1289
        %v1296 = vpack.c.b16 %v1292, %v1291
        %v1302 = vsel %vm1140, %v832, 0
        %1304 = vmatpush.bf16.msra.mxu0 0
        %1305 = vmatpush.bf16.msra.mxu0 0
        %1306 = vmatpush.bf16.msra.mxu0 0
        %1307 = vmatpush.bf16.msra.mxu0 0
        %1308 = vmatpush.bf16.msra.mxu0 %v1296
        %1309 = vmatpush.bf16.msra.mxu0 %v1295
        %1310 = vmatpush.bf16.msra.mxu0 %v1294
        %1311 = vmatpush.bf16.msra.mxu0 %v1293
        %1312 = vmatmul.bf16.gmra.mxu0 %v1302
        %v1313 = vpop.f32.mrf.mxu0
        %v1314 = vadd.f32 0.0, %v1313
        %v1315 = vpop.f32.mrf.mxu0
        %1316 = vdwg.mxu0
        %v1325 = vunpack.c.l.b16 %v900
        %v1326 = vunpack.c.l.b16 %v901
        %v1327 = vunpack.c.l.b16 %v902
        %v1328 = vunpack.c.l.b16 %v903
        %v1329 = vunpack.c.l.b16 %v904
        %v1330 = vunpack.c.l.b16 %v905
        %v1331 = vunpack.c.l.b16 %v906
        %v1332 = vunpack.c.l.b16 %v907
        %v1333 = vpack.c.b16 %v1326, %v1325
        %v1334 = vpack.c.b16 %v1328, %v1327
        %v1335 = vpack.c.b16 %v1330, %v1329
        %v1336 = vpack.c.b16 %v1332, %v1331
        %v1342 = vsel %vm1140, %v833, 0
        %1344 = vmatpush.bf16.msra.mxu0 0
        %1345 = vmatpush.bf16.msra.mxu0 0
        %1346 = vmatpush.bf16.msra.mxu0 0
        %1347 = vmatpush.bf16.msra.mxu0 0
        %1348 = vmatpush.bf16.msra.mxu0 %v1336
        %1349 = vmatpush.bf16.msra.mxu0 %v1335
        %1350 = vmatpush.bf16.msra.mxu0 %v1334
        %1351 = vmatpush.bf16.msra.mxu0 %v1333
        %1352 = vmatmul.bf16.gmra.mxu0 %v1342
        %v1353 = vpop.f32.mrf.mxu0
        %v1354 = vadd.f32 0.0, %v1353
        %v1355 = vpop.f32.mrf.mxu0
        %1356 = vdwg.mxu0
        %v1365 = vunpack.c.l.b16 %v908
        %v1366 = vunpack.c.l.b16 %v909
        %v1367 = vunpack.c.l.b16 %v910
        %v1368 = vunpack.c.l.b16 %v911
        %v1369 = vunpack.c.l.b16 %v912
        %v1370 = vunpack.c.l.b16 %v913
        %v1371 = vunpack.c.l.b16 %v914
        %v1372 = vunpack.c.l.b16 %v915
        %v1373 = vpack.c.b16 %v1366, %v1365
        %v1374 = vpack.c.b16 %v1368, %v1367
        %v1375 = vpack.c.b16 %v1370, %v1369
        %v1376 = vpack.c.b16 %v1372, %v1371
        %v1382 = vsel %vm1140, %v834, 0
        %1384 = vmatpush.bf16.msra.mxu0 0
        %1385 = vmatpush.bf16.msra.mxu0 0
        %1386 = vmatpush.bf16.msra.mxu0 0
        %1387 = vmatpush.bf16.msra.mxu0 0
        %1388 = vmatpush.bf16.msra.mxu0 %v1376
        %1389 = vmatpush.bf16.msra.mxu0 %v1375
        %1390 = vmatpush.bf16.msra.mxu0 %v1374
        %1391 = vmatpush.bf16.msra.mxu0 %v1373
        %1392 = vmatmul.bf16.gmra.mxu0 %v1382
        %v1393 = vpop.f32.mrf.mxu0
        %v1394 = vadd.f32 0.0, %v1393
        %v1395 = vpop.f32.mrf.mxu0
        %1396 = vdwg.mxu0
        %v1405 = vunpack.c.l.b16 %v916
        %v1406 = vunpack.c.l.b16 %v917
        %v1407 = vunpack.c.l.b16 %v918
        %v1408 = vunpack.c.l.b16 %v919
        %v1409 = vunpack.c.l.b16 %v920
        %v1410 = vunpack.c.l.b16 %v921
        %v1411 = vunpack.c.l.b16 %v922
        %v1412 = vunpack.c.l.b16 %v923
        %v1413 = vpack.c.b16 %v1406, %v1405
        %v1414 = vpack.c.b16 %v1408, %v1407
        %v1415 = vpack.c.b16 %v1410, %v1409
        %v1416 = vpack.c.b16 %v1412, %v1411
        %v1422 = vsel %vm1140, %v835, 0
        %1424 = vmatpush.bf16.msra.mxu0 0
        %1425 = vmatpush.bf16.msra.mxu0 0
        %1426 = vmatpush.bf16.msra.mxu0 0
        %1427 = vmatpush.bf16.msra.mxu0 0
        %1428 = vmatpush.bf16.msra.mxu0 %v1416
        %1429 = vmatpush.bf16.msra.mxu0 %v1415
        %1430 = vmatpush.bf16.msra.mxu0 %v1414
        %1431 = vmatpush.bf16.msra.mxu0 %v1413
        %1432 = vmatmul.bf16.gmra.mxu0 %v1422
        %v1433 = vpop.f32.mrf.mxu0
        %v1434 = vadd.f32 0.0, %v1433
        %v1435 = vpop.f32.mrf.mxu0
        %1436 = vdwg.mxu0
        %v1445 = vunpack.c.l.b16 %v924
        %v1446 = vunpack.c.l.b16 %v925
        %v1447 = vunpack.c.l.b16 %v926
        %v1448 = vunpack.c.l.b16 %v927
        %v1449 = vunpack.c.l.b16 %v928
        %v1450 = vunpack.c.l.b16 %v929
        %v1451 = vunpack.c.l.b16 %v930
        %v1452 = vunpack.c.l.b16 %v931
        %v1453 = vpack.c.b16 %v1446, %v1445
        %v1454 = vpack.c.b16 %v1448, %v1447
        %v1455 = vpack.c.b16 %v1450, %v1449
        %v1456 = vpack.c.b16 %v1452, %v1451
        %v1462 = vsel %vm1140, %v836, 0
        %1464 = vmatpush.bf16.msra.mxu0 0
        %1465 = vmatpush.bf16.msra.mxu0 0
        %1466 = vmatpush.bf16.msra.mxu0 0
        %1467 = vmatpush.bf16.msra.mxu0 0
        %1468 = vmatpush.bf16.msra.mxu0 %v1456
        %1469 = vmatpush.bf16.msra.mxu0 %v1455
        %1470 = vmatpush.bf16.msra.mxu0 %v1454
        %1471 = vmatpush.bf16.msra.mxu0 %v1453
        %1472 = vmatmul.bf16.gmra.mxu0 %v1462
        %v1473 = vpop.f32.mrf.mxu0
        %v1474 = vadd.f32 0.0, %v1473
        %v1475 = vpop.f32.mrf.mxu0
        %1476 = vdwg.mxu0
        %v1485 = vunpack.c.l.b16 %v932
        %v1486 = vunpack.c.l.b16 %v933
        %v1487 = vunpack.c.l.b16 %v934
        %v1488 = vunpack.c.l.b16 %v935
        %v1489 = vunpack.c.l.b16 %v936
        %v1490 = vunpack.c.l.b16 %v937
        %v1491 = vunpack.c.l.b16 %v938
        %v1492 = vunpack.c.l.b16 %v939
        %v1493 = vpack.c.b16 %v1486, %v1485
        %v1494 = vpack.c.b16 %v1488, %v1487
        %v1495 = vpack.c.b16 %v1490, %v1489
        %v1496 = vpack.c.b16 %v1492, %v1491
        %v1502 = vsel %vm1140, %v837, 0
        %1504 = vmatpush.bf16.msra.mxu0 0
        %1505 = vmatpush.bf16.msra.mxu0 0
        %1506 = vmatpush.bf16.msra.mxu0 0
        %1507 = vmatpush.bf16.msra.mxu0 0
        %1508 = vmatpush.bf16.msra.mxu0 %v1496
        %1509 = vmatpush.bf16.msra.mxu0 %v1495
        %1510 = vmatpush.bf16.msra.mxu0 %v1494
        %1511 = vmatpush.bf16.msra.mxu0 %v1493
        %1512 = vmatmul.bf16.gmra.mxu0 %v1502
        %v1513 = vpop.f32.mrf.mxu0
        %v1514 = vadd.f32 0.0, %v1513
        %v1515 = vpop.f32.mrf.mxu0
        %1516 = vdwg.mxu0
        %v1525 = vunpack.c.l.b16 %v940
        %v1526 = vunpack.c.l.b16 %v941
        %v1527 = vunpack.c.l.b16 %v942
        %v1528 = vunpack.c.l.b16 %v943
        %v1529 = vunpack.c.l.b16 %v944
        %v1530 = vunpack.c.l.b16 %v945
        %v1531 = vunpack.c.l.b16 %v946
        %v1532 = vunpack.c.l.b16 %v947
        %v1533 = vpack.c.b16 %v1526, %v1525
        %v1534 = vpack.c.b16 %v1528, %v1527
        %v1535 = vpack.c.b16 %v1530, %v1529
        %v1536 = vpack.c.b16 %v1532, %v1531
        %v1542 = vsel %vm1140, %v838, 0
        %1544 = vmatpush.bf16.msra.mxu0 0
        %1545 = vmatpush.bf16.msra.mxu0 0
        %1546 = vmatpush.bf16.msra.mxu0 0
        %1547 = vmatpush.bf16.msra.mxu0 0
        %1548 = vmatpush.bf16.msra.mxu0 %v1536
        %1549 = vmatpush.bf16.msra.mxu0 %v1535
        %1550 = vmatpush.bf16.msra.mxu0 %v1534
        %1551 = vmatpush.bf16.msra.mxu0 %v1533
        %1552 = vmatmul.bf16.gmra.mxu0 %v1542
        %v1553 = vpop.f32.mrf.mxu0
        %v1554 = vadd.f32 0.0, %v1553
        %v1555 = vpop.f32.mrf.mxu0
        %1556 = vdwg.mxu0
        %v1565 = vunpack.c.l.b16 %v948
        %v1566 = vunpack.c.l.b16 %v949
        %v1567 = vunpack.c.l.b16 %v950
        %v1568 = vunpack.c.l.b16 %v951
        %v1569 = vunpack.c.l.b16 %v952
        %v1570 = vunpack.c.l.b16 %v953
        %v1571 = vunpack.c.l.b16 %v954
        %v1572 = vunpack.c.l.b16 %v955
        %v1573 = vpack.c.b16 %v1566, %v1565
        %v1574 = vpack.c.b16 %v1568, %v1567
        %v1575 = vpack.c.b16 %v1570, %v1569
        %v1576 = vpack.c.b16 %v1572, %v1571
        %v1582 = vsel %vm1140, %v839, 0
        %1584 = vmatpush.bf16.msra.mxu0 0
        %1585 = vmatpush.bf16.msra.mxu0 0
        %1586 = vmatpush.bf16.msra.mxu0 0
        %1587 = vmatpush.bf16.msra.mxu0 0
        %1588 = vmatpush.bf16.msra.mxu0 %v1576
        %1589 = vmatpush.bf16.msra.mxu0 %v1575
        %1590 = vmatpush.bf16.msra.mxu0 %v1574
        %1591 = vmatpush.bf16.msra.mxu0 %v1573
        %1592 = vmatmul.bf16.gmra.mxu0 %v1582
        %v1593 = vpop.f32.mrf.mxu0
        %v1594 = vadd.f32 0.0, %v1593
        %v1595 = vpop.f32.mrf.mxu0
        %1596 = vdwg.mxu0
        %v1605 = vunpack.c.l.b16 %v956
        %v1606 = vunpack.c.l.b16 %v957
        %v1607 = vunpack.c.l.b16 %v958
        %v1608 = vunpack.c.l.b16 %v959
        %v1609 = vunpack.c.l.b16 %v960
        %v1610 = vunpack.c.l.b16 %v961
        %v1611 = vunpack.c.l.b16 %v962
        %v1612 = vunpack.c.l.b16 %v963
        %v1613 = vpack.c.b16 %v1606, %v1605
        %v1614 = vpack.c.b16 %v1608, %v1607
        %v1615 = vpack.c.b16 %v1610, %v1609
        %v1616 = vpack.c.b16 %v1612, %v1611
        %v1622 = vsel %vm1140, %v840, 0
        %1624 = vmatpush.bf16.msra.mxu0 0
        %1625 = vmatpush.bf16.msra.mxu0 0
        %1626 = vmatpush.bf16.msra.mxu0 0
        %1627 = vmatpush.bf16.msra.mxu0 0
        %1628 = vmatpush.bf16.msra.mxu0 %v1616
        %1629 = vmatpush.bf16.msra.mxu0 %v1615
        %1630 = vmatpush.bf16.msra.mxu0 %v1614
        %1631 = vmatpush.bf16.msra.mxu0 %v1613
        %1632 = vmatmul.bf16.gmra.mxu0 %v1622
        %v1633 = vpop.f32.mrf.mxu0
        %v1634 = vadd.f32 0.0, %v1633
        %v1635 = vpop.f32.mrf.mxu0
        %1636 = vdwg.mxu0
        %v1645 = vunpack.c.l.b16 %v964
        %v1646 = vunpack.c.l.b16 %v965
        %v1647 = vunpack.c.l.b16 %v966
        %v1648 = vunpack.c.l.b16 %v967
        %v1649 = vunpack.c.l.b16 %v968
        %v1650 = vunpack.c.l.b16 %v969
        %v1651 = vunpack.c.l.b16 %v970
        %v1652 = vunpack.c.l.b16 %v971
        %v1653 = vpack.c.b16 %v1646, %v1645
        %v1654 = vpack.c.b16 %v1648, %v1647
        %v1655 = vpack.c.b16 %v1650, %v1649
        %v1656 = vpack.c.b16 %v1652, %v1651
        %v1662 = vsel %vm1140, %v841, 0
        %1664 = vmatpush.bf16.msra.mxu0 0
        %1665 = vmatpush.bf16.msra.mxu0 0
        %1666 = vmatpush.bf16.msra.mxu0 0
        %1667 = vmatpush.bf16.msra.mxu0 0
        %1668 = vmatpush.bf16.msra.mxu0 %v1656
        %1669 = vmatpush.bf16.msra.mxu0 %v1655
        %1670 = vmatpush.bf16.msra.mxu0 %v1654
        %1671 = vmatpush.bf16.msra.mxu0 %v1653
        %1672 = vmatmul.bf16.gmra.mxu0 %v1662
        %v1673 = vpop.f32.mrf.mxu0
        %v1674 = vadd.f32 0.0, %v1673
        %v1675 = vpop.f32.mrf.mxu0
        %1676 = vdwg.mxu0
        %v1685 = vunpack.c.l.b16 %v972
        %v1686 = vunpack.c.l.b16 %v973
        %v1687 = vunpack.c.l.b16 %v974
        %v1688 = vunpack.c.l.b16 %v975
        %v1689 = vunpack.c.l.b16 %v976
        %v1690 = vunpack.c.l.b16 %v977
        %v1691 = vunpack.c.l.b16 %v978
        %v1692 = vunpack.c.l.b16 %v979
        %v1693 = vpack.c.b16 %v1686, %v1685
        %v1694 = vpack.c.b16 %v1688, %v1687
        %v1695 = vpack.c.b16 %v1690, %v1689
        %v1696 = vpack.c.b16 %v1692, %v1691
        %v1702 = vsel %vm1140, %v842, 0
        %1704 = vmatpush.bf16.msra.mxu0 0
        %1705 = vmatpush.bf16.msra.mxu0 0
        %1706 = vmatpush.bf16.msra.mxu0 0
        %1707 = vmatpush.bf16.msra.mxu0 0
        %1708 = vmatpush.bf16.msra.mxu0 %v1696
        %1709 = vmatpush.bf16.msra.mxu0 %v1695
        %1710 = vmatpush.bf16.msra.mxu0 %v1694
        %1711 = vmatpush.bf16.msra.mxu0 %v1693
        %1712 = vmatmul.bf16.gmra.mxu0 %v1702
        %v1713 = vpop.f32.mrf.mxu0
        %v1714 = vadd.f32 0.0, %v1713
        %v1715 = vpop.f32.mrf.mxu0
        %1716 = vdwg.mxu0
        %v1725 = vunpack.c.l.b16 %v980
        %v1726 = vunpack.c.l.b16 %v981
        %v1727 = vunpack.c.l.b16 %v982
        %v1728 = vunpack.c.l.b16 %v983
        %v1729 = vunpack.c.l.b16 %v984
        %v1730 = vunpack.c.l.b16 %v985
        %v1731 = vunpack.c.l.b16 %v986
        %v1732 = vunpack.c.l.b16 %v987
        %v1733 = vpack.c.b16 %v1726, %v1725
        %v1734 = vpack.c.b16 %v1728, %v1727
        %v1735 = vpack.c.b16 %v1730, %v1729
        %v1736 = vpack.c.b16 %v1732, %v1731
        %v1742 = vsel %vm1140, %v843, 0
        %1744 = vmatpush.bf16.msra.mxu0 0
        %1745 = vmatpush.bf16.msra.mxu0 0
        %1746 = vmatpush.bf16.msra.mxu0 0
        %1747 = vmatpush.bf16.msra.mxu0 0
        %1748 = vmatpush.bf16.msra.mxu0 %v1736
        %1749 = vmatpush.bf16.msra.mxu0 %v1735
        %1750 = vmatpush.bf16.msra.mxu0 %v1734
        %1751 = vmatpush.bf16.msra.mxu0 %v1733
        %1752 = vmatmul.bf16.gmra.mxu0 %v1742
        %v1753 = vpop.f32.mrf.mxu0
        %v1754 = vadd.f32 0.0, %v1753
        %v1755 = vpop.f32.mrf.mxu0
        %1756 = vdwg.mxu0
        %v1765 = vunpack.c.l.b16 %v988
        %v1766 = vunpack.c.l.b16 %v989
        %v1767 = vunpack.c.l.b16 %v990
        %v1768 = vunpack.c.l.b16 %v991
        %v1769 = vunpack.c.l.b16 %v992
        %v1770 = vunpack.c.l.b16 %v993
        %v1771 = vunpack.c.l.b16 %v994
        %v1772 = vunpack.c.l.b16 %v995
        %v1773 = vpack.c.b16 %v1766, %v1765
        %v1774 = vpack.c.b16 %v1768, %v1767
        %v1775 = vpack.c.b16 %v1770, %v1769
        %v1776 = vpack.c.b16 %v1772, %v1771
        %v1782 = vsel %vm1140, %v844, 0
        %1784 = vmatpush.bf16.msra.mxu0 0
        %1785 = vmatpush.bf16.msra.mxu0 0
        %1786 = vmatpush.bf16.msra.mxu0 0
        %1787 = vmatpush.bf16.msra.mxu0 0
        %1788 = vmatpush.bf16.msra.mxu0 %v1776
        %1789 = vmatpush.bf16.msra.mxu0 %v1775
        %1790 = vmatpush.bf16.msra.mxu0 %v1774
        %1791 = vmatpush.bf16.msra.mxu0 %v1773
        %1792 = vmatmul.bf16.gmra.mxu0 %v1782
        %v1793 = vpop.f32.mrf.mxu0
        %v1794 = vadd.f32 0.0, %v1793
        %v1795 = vpop.f32.mrf.mxu0
        %1796 = vdwg.mxu0
        %v1805 = vunpack.c.l.b16 %v996
        %v1806 = vunpack.c.l.b16 %v997
        %v1807 = vunpack.c.l.b16 %v998
        %v1808 = vunpack.c.l.b16 %v999
        %v1809 = vunpack.c.l.b16 %v1000
        %v1810 = vunpack.c.l.b16 %v1001
        %v1811 = vunpack.c.l.b16 %v1002
        %v1812 = vunpack.c.l.b16 %v1003
        %v1813 = vpack.c.b16 %v1806, %v1805
        %v1814 = vpack.c.b16 %v1808, %v1807
        %v1815 = vpack.c.b16 %v1810, %v1809
        %v1816 = vpack.c.b16 %v1812, %v1811
        %v1822 = vsel %vm1140, %v845, 0
        %1824 = vmatpush.bf16.msra.mxu0 0
        %1825 = vmatpush.bf16.msra.mxu0 0
        %1826 = vmatpush.bf16.msra.mxu0 0
        %1827 = vmatpush.bf16.msra.mxu0 0
        %1828 = vmatpush.bf16.msra.mxu0 %v1816
        %1829 = vmatpush.bf16.msra.mxu0 %v1815
        %1830 = vmatpush.bf16.msra.mxu0 %v1814
        %1831 = vmatpush.bf16.msra.mxu0 %v1813
        %1832 = vmatmul.bf16.gmra.mxu0 %v1822
        %v1833 = vpop.f32.mrf.mxu0
        %v1834 = vadd.f32 0.0, %v1833
        %v1835 = vpop.f32.mrf.mxu0
        %1836 = vdwg.mxu0
        %v1845 = vunpack.c.l.b16 %v1004
        %v1846 = vunpack.c.l.b16 %v1005
        %v1847 = vunpack.c.l.b16 %v1006
        %v1848 = vunpack.c.l.b16 %v1007
        %v1849 = vunpack.c.l.b16 %v1008
        %v1850 = vunpack.c.l.b16 %v1009
        %v1851 = vunpack.c.l.b16 %v1010
        %v1852 = vunpack.c.l.b16 %v1011
        %v1853 = vpack.c.b16 %v1846, %v1845
        %v1854 = vpack.c.b16 %v1848, %v1847
        %v1855 = vpack.c.b16 %v1850, %v1849
        %v1856 = vpack.c.b16 %v1852, %v1851
        %v1862 = vsel %vm1140, %v846, 0
        %1864 = vmatpush.bf16.msra.mxu0 0
        %1865 = vmatpush.bf16.msra.mxu0 0
        %1866 = vmatpush.bf16.msra.mxu0 0
        %1867 = vmatpush.bf16.msra.mxu0 0
        %1868 = vmatpush.bf16.msra.mxu0 %v1856
        %1869 = vmatpush.bf16.msra.mxu0 %v1855
        %1870 = vmatpush.bf16.msra.mxu0 %v1854
        %1871 = vmatpush.bf16.msra.mxu0 %v1853
        %1872 = vmatmul.bf16.gmra.mxu0 %v1862
        %v1873 = vpop.f32.mrf.mxu0
        %v1874 = vadd.f32 0.0, %v1873
        %v1875 = vpop.f32.mrf.mxu0
        %1876 = vdwg.mxu0
        %v1885 = vunpack.c.l.b16 %v1012
        %v1886 = vunpack.c.l.b16 %v1013
        %v1887 = vunpack.c.l.b16 %v1014
        %v1888 = vunpack.c.l.b16 %v1015
        %v1889 = vunpack.c.l.b16 %v1016
        %v1890 = vunpack.c.l.b16 %v1017
        %v1891 = vunpack.c.l.b16 %v1018
        %v1892 = vunpack.c.l.b16 %v1019
        %v1893 = vpack.c.b16 %v1886, %v1885
        %v1894 = vpack.c.b16 %v1888, %v1887
        %v1895 = vpack.c.b16 %v1890, %v1889
        %v1896 = vpack.c.b16 %v1892, %v1891
        %v1902 = vsel %vm1140, %v847, 0
        %1904 = vmatpush.bf16.msra.mxu0 0
        %1905 = vmatpush.bf16.msra.mxu0 0
        %1906 = vmatpush.bf16.msra.mxu0 0
        %1907 = vmatpush.bf16.msra.mxu0 0
        %1908 = vmatpush.bf16.msra.mxu0 %v1896
        %1909 = vmatpush.bf16.msra.mxu0 %v1895
        %1910 = vmatpush.bf16.msra.mxu0 %v1894
        %1911 = vmatpush.bf16.msra.mxu0 %v1893
        %1912 = vmatmul.bf16.gmra.mxu0 %v1902
        %v1913 = vpop.f32.mrf.mxu0
        %v1914 = vadd.f32 0.0, %v1913
        %v1915 = vpop.f32.mrf.mxu0
        %1916 = vdwg.mxu0
        %v1925 = vunpack.c.l.b16 %v1020
        %v1926 = vunpack.c.l.b16 %v1021
        %v1927 = vunpack.c.l.b16 %v1022
        %v1928 = vunpack.c.l.b16 %v1023
        %v1929 = vunpack.c.l.b16 %v1024
        %v1930 = vunpack.c.l.b16 %v1025
        %v1931 = vunpack.c.l.b16 %v1026
        %v1932 = vunpack.c.l.b16 %v1027
        %v1933 = vpack.c.b16 %v1926, %v1925
        %v1934 = vpack.c.b16 %v1928, %v1927
        %v1935 = vpack.c.b16 %v1930, %v1929
        %v1936 = vpack.c.b16 %v1932, %v1931
        %v1942 = vsel %vm1140, %v848, 0
        %1944 = vmatpush.bf16.msra.mxu0 0
        %1945 = vmatpush.bf16.msra.mxu0 0
        %1946 = vmatpush.bf16.msra.mxu0 0
        %1947 = vmatpush.bf16.msra.mxu0 0
        %1948 = vmatpush.bf16.msra.mxu0 %v1936
        %1949 = vmatpush.bf16.msra.mxu0 %v1935
        %1950 = vmatpush.bf16.msra.mxu0 %v1934
        %1951 = vmatpush.bf16.msra.mxu0 %v1933
        %1952 = vmatmul.bf16.gmra.mxu0 %v1942
        %v1953 = vpop.f32.mrf.mxu0
        %v1954 = vadd.f32 0.0, %v1953
        %v1955 = vpop.f32.mrf.mxu0
        %1956 = vdwg.mxu0
        %v1965 = vunpack.c.l.b16 %v1028
        %v1966 = vunpack.c.l.b16 %v1029
        %v1967 = vunpack.c.l.b16 %v1030
        %v1968 = vunpack.c.l.b16 %v1031
        %v1969 = vunpack.c.l.b16 %v1032
        %v1970 = vunpack.c.l.b16 %v1033
        %v1971 = vunpack.c.l.b16 %v1034
        %v1972 = vunpack.c.l.b16 %v1035
        %v1973 = vpack.c.b16 %v1966, %v1965
        %v1974 = vpack.c.b16 %v1968, %v1967
        %v1975 = vpack.c.b16 %v1970, %v1969
        %v1976 = vpack.c.b16 %v1972, %v1971
        %v1982 = vsel %vm1140, %v849, 0
        %1984 = vmatpush.bf16.msra.mxu0 0
        %1985 = vmatpush.bf16.msra.mxu0 0
        %1986 = vmatpush.bf16.msra.mxu0 0
        %1987 = vmatpush.bf16.msra.mxu0 0
        %1988 = vmatpush.bf16.msra.mxu0 %v1976
        %1989 = vmatpush.bf16.msra.mxu0 %v1975
        %1990 = vmatpush.bf16.msra.mxu0 %v1974
        %1991 = vmatpush.bf16.msra.mxu0 %v1973
        %1992 = vmatmul.bf16.gmra.mxu0 %v1982
        %v1993 = vpop.f32.mrf.mxu0
        %v1994 = vadd.f32 0.0, %v1993
        %v1995 = vpop.f32.mrf.mxu0
        %1996 = vdwg.mxu0
        %v2005 = vunpack.c.l.b16 %v1036
        %v2006 = vunpack.c.l.b16 %v1037
        %v2007 = vunpack.c.l.b16 %v1038
        %v2008 = vunpack.c.l.b16 %v1039
        %v2009 = vunpack.c.l.b16 %v1040
        %v2010 = vunpack.c.l.b16 %v1041
        %v2011 = vunpack.c.l.b16 %v1042
        %v2012 = vunpack.c.l.b16 %v1043
        %v2013 = vpack.c.b16 %v2006, %v2005
        %v2014 = vpack.c.b16 %v2008, %v2007
        %v2015 = vpack.c.b16 %v2010, %v2009
        %v2016 = vpack.c.b16 %v2012, %v2011
        %v2022 = vsel %vm1140, %v850, 0
        %2024 = vmatpush.bf16.msra.mxu0 0
        %2025 = vmatpush.bf16.msra.mxu0 0
        %2026 = vmatpush.bf16.msra.mxu0 0
        %2027 = vmatpush.bf16.msra.mxu0 0
        %2028 = vmatpush.bf16.msra.mxu0 %v2016
        %2029 = vmatpush.bf16.msra.mxu0 %v2015
        %2030 = vmatpush.bf16.msra.mxu0 %v2014
        %2031 = vmatpush.bf16.msra.mxu0 %v2013
        %2032 = vmatmul.bf16.gmra.mxu0 %v2022
        %v2033 = vpop.f32.mrf.mxu0
        %v2034 = vadd.f32 0.0, %v2033
        %v2035 = vpop.f32.mrf.mxu0
        %2036 = vdwg.mxu0
        %v2045 = vunpack.c.l.b16 %v1044
        %v2046 = vunpack.c.l.b16 %v1045
        %v2047 = vunpack.c.l.b16 %v1046
        %v2048 = vunpack.c.l.b16 %v1047
        %v2049 = vunpack.c.l.b16 %v1048
        %v2050 = vunpack.c.l.b16 %v1049
        %v2051 = vunpack.c.l.b16 %v1050
        %v2052 = vunpack.c.l.b16 %v1051
        %v2053 = vpack.c.b16 %v2046, %v2045
        %v2054 = vpack.c.b16 %v2048, %v2047
        %v2055 = vpack.c.b16 %v2050, %v2049
        %v2056 = vpack.c.b16 %v2052, %v2051
        %v2062 = vsel %vm1140, %v851, 0
        %2064 = vmatpush.bf16.msra.mxu0 0
        %2065 = vmatpush.bf16.msra.mxu0 0
        %2066 = vmatpush.bf16.msra.mxu0 0
        %2067 = vmatpush.bf16.msra.mxu0 0
        %2068 = vmatpush.bf16.msra.mxu0 %v2056
        %2069 = vmatpush.bf16.msra.mxu0 %v2055
        %2070 = vmatpush.bf16.msra.mxu0 %v2054
        %2071 = vmatpush.bf16.msra.mxu0 %v2053
        %2072 = vmatmul.bf16.gmra.mxu0 %v2062
        %v2073 = vpop.f32.mrf.mxu0
        %v2074 = vadd.f32 0.0, %v2073
        %v2075 = vpop.f32.mrf.mxu0
        %2076 = vdwg.mxu0
        %v2085 = vunpack.c.l.b16 %v1052
        %v2086 = vunpack.c.l.b16 %v1053
        %v2087 = vunpack.c.l.b16 %v1054
        %v2088 = vunpack.c.l.b16 %v1055
        %v2089 = vunpack.c.l.b16 %v1056
        %v2090 = vunpack.c.l.b16 %v1057
        %v2091 = vunpack.c.l.b16 %v1058
        %v2092 = vunpack.c.l.b16 %v1059
        %v2093 = vpack.c.b16 %v2086, %v2085
        %v2094 = vpack.c.b16 %v2088, %v2087
        %v2095 = vpack.c.b16 %v2090, %v2089
        %v2096 = vpack.c.b16 %v2092, %v2091
        %v2102 = vsel %vm1140, %v852, 0
        %2104 = vmatpush.bf16.msra.mxu0 0
        %2105 = vmatpush.bf16.msra.mxu0 0
        %2106 = vmatpush.bf16.msra.mxu0 0
        %2107 = vmatpush.bf16.msra.mxu0 0
        %2108 = vmatpush.bf16.msra.mxu0 %v2096
        %2109 = vmatpush.bf16.msra.mxu0 %v2095
        %2110 = vmatpush.bf16.msra.mxu0 %v2094
        %2111 = vmatpush.bf16.msra.mxu0 %v2093
        %2112 = vmatmul.bf16.gmra.mxu0 %v2102
        %v2113 = vpop.f32.mrf.mxu0
        %v2114 = vadd.f32 0.0, %v2113
        %v2115 = vpop.f32.mrf.mxu0
        %2116 = vdwg.mxu0
        %v2125 = vunpack.c.l.b16 %v1060
        %v2126 = vunpack.c.l.b16 %v1061
        %v2127 = vunpack.c.l.b16 %v1062
        %v2128 = vunpack.c.l.b16 %v1063
        %v2129 = vunpack.c.l.b16 %v1064
        %v2130 = vunpack.c.l.b16 %v1065
        %v2131 = vunpack.c.l.b16 %v1066
        %v2132 = vunpack.c.l.b16 %v1067
        %v2133 = vpack.c.b16 %v2126, %v2125
        %v2134 = vpack.c.b16 %v2128, %v2127
        %v2135 = vpack.c.b16 %v2130, %v2129
        %v2136 = vpack.c.b16 %v2132, %v2131
        %v2142 = vsel %vm1140, %v853, 0
        %2144 = vmatpush.bf16.msra.mxu0 0
        %2145 = vmatpush.bf16.msra.mxu0 0
        %2146 = vmatpush.bf16.msra.mxu0 0
        %2147 = vmatpush.bf16.msra.mxu0 0
        %2148 = vmatpush.bf16.msra.mxu0 %v2136
        %2149 = vmatpush.bf16.msra.mxu0 %v2135
        %2150 = vmatpush.bf16.msra.mxu0 %v2134
        %2151 = vmatpush.bf16.msra.mxu0 %v2133
        %2152 = vmatmul.bf16.gmra.mxu0 %v2142
        %v2153 = vpop.f32.mrf.mxu0
        %v2154 = vadd.f32 0.0, %v2153
        %v2155 = vpop.f32.mrf.mxu0
        %2156 = vdwg.mxu0
        %v2165 = vunpack.c.l.b16 %v1068
        %v2166 = vunpack.c.l.b16 %v1069
        %v2167 = vunpack.c.l.b16 %v1070
        %v2168 = vunpack.c.l.b16 %v1071
        %v2169 = vunpack.c.l.b16 %v1072
        %v2170 = vunpack.c.l.b16 %v1073
        %v2171 = vunpack.c.l.b16 %v1074
        %v2172 = vunpack.c.l.b16 %v1075
        %v2173 = vpack.c.b16 %v2166, %v2165
        %v2174 = vpack.c.b16 %v2168, %v2167
        %v2175 = vpack.c.b16 %v2170, %v2169
        %v2176 = vpack.c.b16 %v2172, %v2171
        %v2182 = vsel %vm1140, %v854, 0
        %2184 = vmatpush.bf16.msra.mxu0 0
        %2185 = vmatpush.bf16.msra.mxu0 0
        %2186 = vmatpush.bf16.msra.mxu0 0
        %2187 = vmatpush.bf16.msra.mxu0 0
        %2188 = vmatpush.bf16.msra.mxu0 %v2176
        %2189 = vmatpush.bf16.msra.mxu0 %v2175
        %2190 = vmatpush.bf16.msra.mxu0 %v2174
        %2191 = vmatpush.bf16.msra.mxu0 %v2173
        %2192 = vmatmul.bf16.gmra.mxu0 %v2182
        %v2193 = vpop.f32.mrf.mxu0
        %v2194 = vadd.f32 0.0, %v2193
        %v2195 = vpop.f32.mrf.mxu0
        %2196 = vdwg.mxu0
        %v2205 = vunpack.c.l.b16 %v1076
        %v2206 = vunpack.c.l.b16 %v1077
        %v2207 = vunpack.c.l.b16 %v1078
        %v2208 = vunpack.c.l.b16 %v1079
        %v2209 = vunpack.c.l.b16 %v1080
        %v2210 = vunpack.c.l.b16 %v1081
        %v2211 = vunpack.c.l.b16 %v1082
        %v2212 = vunpack.c.l.b16 %v1083
        %v2213 = vpack.c.b16 %v2206, %v2205
        %v2214 = vpack.c.b16 %v2208, %v2207
        %v2215 = vpack.c.b16 %v2210, %v2209
        %v2216 = vpack.c.b16 %v2212, %v2211
        %v2222 = vsel %vm1140, %v855, 0
        %2224 = vmatpush.bf16.msra.mxu0 0
        %2225 = vmatpush.bf16.msra.mxu0 0
        %2226 = vmatpush.bf16.msra.mxu0 0
        %2227 = vmatpush.bf16.msra.mxu0 0
        %2228 = vmatpush.bf16.msra.mxu0 %v2216
        %2229 = vmatpush.bf16.msra.mxu0 %v2215
        %2230 = vmatpush.bf16.msra.mxu0 %v2214
        %2231 = vmatpush.bf16.msra.mxu0 %v2213
        %2232 = vmatmul.bf16.gmra.mxu0 %v2222
        %v2233 = vpop.f32.mrf.mxu0
        %v2234 = vadd.f32 0.0, %v2233
        %v2235 = vpop.f32.mrf.mxu0
        %2236 = vdwg.mxu0
        %v2245 = vunpack.c.l.b16 %v1084
        %v2246 = vunpack.c.l.b16 %v1085
        %v2247 = vunpack.c.l.b16 %v1086
        %v2248 = vunpack.c.l.b16 %v1087
        %v2249 = vunpack.c.l.b16 %v1088
        %v2250 = vunpack.c.l.b16 %v1089
        %v2251 = vunpack.c.l.b16 %v1090
        %v2252 = vunpack.c.l.b16 %v1091
        %v2253 = vpack.c.b16 %v2246, %v2245
        %v2254 = vpack.c.b16 %v2248, %v2247
        %v2255 = vpack.c.b16 %v2250, %v2249
        %v2256 = vpack.c.b16 %v2252, %v2251
        %v2262 = vsel %vm1140, %v856, 0
        %2264 = vmatpush.bf16.msra.mxu0 0
        %2265 = vmatpush.bf16.msra.mxu0 0
        %2266 = vmatpush.bf16.msra.mxu0 0
        %2267 = vmatpush.bf16.msra.mxu0 0
        %2268 = vmatpush.bf16.msra.mxu0 %v2256
        %2269 = vmatpush.bf16.msra.mxu0 %v2255
        %2270 = vmatpush.bf16.msra.mxu0 %v2254
        %2271 = vmatpush.bf16.msra.mxu0 %v2253
        %2272 = vmatmul.bf16.gmra.mxu0 %v2262
        %v2273 = vpop.f32.mrf.mxu0
        %v2274 = vadd.f32 0.0, %v2273
        %v2275 = vpop.f32.mrf.mxu0
        %2276 = vdwg.mxu0
        %v2285 = vunpack.c.l.b16 %v1092
        %v2286 = vunpack.c.l.b16 %v1093
        %v2287 = vunpack.c.l.b16 %v1094
        %v2288 = vunpack.c.l.b16 %v1095
        %v2289 = vunpack.c.l.b16 %v1096
        %v2290 = vunpack.c.l.b16 %v1097
        %v2291 = vunpack.c.l.b16 %v1098
        %v2292 = vunpack.c.l.b16 %v1099
        %v2293 = vpack.c.b16 %v2286, %v2285
        %v2294 = vpack.c.b16 %v2288, %v2287
        %v2295 = vpack.c.b16 %v2290, %v2289
        %v2296 = vpack.c.b16 %v2292, %v2291
        %v2302 = vsel %vm1140, %v857, 0
        %2304 = vmatpush.bf16.msra.mxu0 0
        %2305 = vmatpush.bf16.msra.mxu0 0
        %2306 = vmatpush.bf16.msra.mxu0 0
        %2307 = vmatpush.bf16.msra.mxu0 0
        %2308 = vmatpush.bf16.msra.mxu0 %v2296
        %2309 = vmatpush.bf16.msra.mxu0 %v2295
        %2310 = vmatpush.bf16.msra.mxu0 %v2294
        %2311 = vmatpush.bf16.msra.mxu0 %v2293
        %2312 = vmatmul.bf16.gmra.mxu0 %v2302
        %v2313 = vpop.f32.mrf.mxu0
        %v2314 = vadd.f32 0.0, %v2313
        %v2315 = vpop.f32.mrf.mxu0
        %2316 = vdwg.mxu0
        %v2325 = vunpack.c.l.b16 %v1100
        %v2326 = vunpack.c.l.b16 %v1101
        %v2327 = vunpack.c.l.b16 %v1102
        %v2328 = vunpack.c.l.b16 %v1103
        %v2329 = vunpack.c.l.b16 %v1104
        %v2330 = vunpack.c.l.b16 %v1105
        %v2331 = vunpack.c.l.b16 %v1106
        %v2332 = vunpack.c.l.b16 %v1107
        %v2333 = vpack.c.b16 %v2326, %v2325
        %v2334 = vpack.c.b16 %v2328, %v2327
        %v2335 = vpack.c.b16 %v2330, %v2329
        %v2336 = vpack.c.b16 %v2332, %v2331
        %v2342 = vsel %vm1140, %v858, 0
        %2344 = vmatpush.bf16.msra.mxu0 0
        %2345 = vmatpush.bf16.msra.mxu0 0
        %2346 = vmatpush.bf16.msra.mxu0 0
        %2347 = vmatpush.bf16.msra.mxu0 0
        %2348 = vmatpush.bf16.msra.mxu0 %v2336
        %2349 = vmatpush.bf16.msra.mxu0 %v2335
        %2350 = vmatpush.bf16.msra.mxu0 %v2334
        %2351 = vmatpush.bf16.msra.mxu0 %v2333
        %2352 = vmatmul.bf16.gmra.mxu0 %v2342
        %v2353 = vpop.f32.mrf.mxu0
        %v2354 = vadd.f32 0.0, %v2353
        %v2355 = vpop.f32.mrf.mxu0
        %2356 = vdwg.mxu0
        %v2365 = vunpack.c.l.b16 %v1108
        %v2366 = vunpack.c.l.b16 %v1109
        %v2367 = vunpack.c.l.b16 %v1110
        %v2368 = vunpack.c.l.b16 %v1111
        %v2369 = vunpack.c.l.b16 %v1112
        %v2370 = vunpack.c.l.b16 %v1113
        %v2371 = vunpack.c.l.b16 %v1114
        %v2372 = vunpack.c.l.b16 %v1115
        %v2373 = vpack.c.b16 %v2366, %v2365
        %v2374 = vpack.c.b16 %v2368, %v2367
        %v2375 = vpack.c.b16 %v2370, %v2369
        %v2376 = vpack.c.b16 %v2372, %v2371
        %v2382 = vsel %vm1140, %v859, 0
        %2384 = vmatpush.bf16.msra.mxu0 0
        %2385 = vmatpush.bf16.msra.mxu0 0
        %2386 = vmatpush.bf16.msra.mxu0 0
        %2387 = vmatpush.bf16.msra.mxu0 0
        %2388 = vmatpush.bf16.msra.mxu0 %v2376
        %2389 = vmatpush.bf16.msra.mxu0 %v2375
        %2390 = vmatpush.bf16.msra.mxu0 %v2374
        %2391 = vmatpush.bf16.msra.mxu0 %v2373
        %2392 = vmatmul.bf16.gmra.mxu0 %v2382
        %v2393 = vpop.f32.mrf.mxu0
        %v2394 = vadd.f32 0.0, %v2393
        %v2395 = vpop.f32.mrf.mxu0
        %2396 = vdwg.mxu0
        %v2397 = vld [vmem:[%s291] sm:$0x1]
        %v2399 = vperm.slane %v2397, 0
        %v2401 = vadd.f32 %v1154, %v2399
        %v2402 = vadd.f32 %v1194, %v2399
        %v2403 = vadd.f32 %v1234, %v2399
        %v2404 = vadd.f32 %v1274, %v2399
        %v2405 = vadd.f32 %v1314, %v2399
        %v2406 = vadd.f32 %v1354, %v2399
        %v2407 = vadd.f32 %v1394, %v2399
        %v2408 = vadd.f32 %v1434, %v2399
        %v2409 = vadd.f32 %v1474, %v2399
        %v2410 = vadd.f32 %v1514, %v2399
        %v2411 = vadd.f32 %v1554, %v2399
        %v2412 = vadd.f32 %v1594, %v2399
        %v2413 = vadd.f32 %v1634, %v2399
        %v2414 = vadd.f32 %v1674, %v2399
        %v2415 = vadd.f32 %v1714, %v2399
        %v2416 = vadd.f32 %v1754, %v2399
        %v2417 = vadd.f32 %v1794, %v2399
        %v2418 = vadd.f32 %v1834, %v2399
        %v2419 = vadd.f32 %v1874, %v2399
        %v2420 = vadd.f32 %v1914, %v2399
        %v2421 = vadd.f32 %v1954, %v2399
        %v2422 = vadd.f32 %v1994, %v2399
        %v2423 = vadd.f32 %v2034, %v2399
        %v2424 = vadd.f32 %v2074, %v2399
        %v2425 = vadd.f32 %v2114, %v2399
        %v2426 = vadd.f32 %v2154, %v2399
        %v2427 = vadd.f32 %v2194, %v2399
        %v2428 = vadd.f32 %v2234, %v2399
        %v2429 = vadd.f32 %v2274, %v2399
        %v2430 = vadd.f32 %v2314, %v2399
        %v2431 = vadd.f32 %v2354, %v2399
        %v2432 = vadd.f32 %v2394, %v2399
        %v2465 = vrot.slane %v2402, 7
        %vm2466 = vcmask 1041409
        %v2467 = vsel %vm2466, %v2465, %v2401
        %v2468 = vrot.slane %v2403, 6
        %vm2469 = vcmask 1042434
        %v2470 = vsel %vm2469, %v2468, %v2467
        %v2471 = vrot.slane %v2404, 5
        %vm2472 = vcmask 1043459
        %v2473 = vsel %vm2472, %v2471, %v2470
        %v2474 = vrot.slane %v2405, 4
        %vm2475 = vcmask 1044484
        %v2476 = vsel %vm2475, %v2474, %v2473
        %v2477 = vrot.slane %v2406, 3
        %vm2478 = vcmask 1045509
        %v2479 = vsel %vm2478, %v2477, %v2476
        %v2480 = vrot.slane %v2407, 2
        %vm2481 = vcmask 1046534
        %v2482 = vsel %vm2481, %v2480, %v2479
        %v2483 = vrot.slane %v2408, 1
        %vm2484 = vcmask 1047559
        %v2485 = vsel %vm2484, %v2483, %v2482
        %v2486 = vrot.slane %v2410, 7
        %v2487 = vsel %vm2466, %v2486, %v2409
        %v2488 = vrot.slane %v2411, 6
        %v2489 = vsel %vm2469, %v2488, %v2487
        %v2490 = vrot.slane %v2412, 5
        %v2491 = vsel %vm2472, %v2490, %v2489
        %v2492 = vrot.slane %v2413, 4
        %v2493 = vsel %vm2475, %v2492, %v2491
        %v2494 = vrot.slane %v2414, 3
        %v2495 = vsel %vm2478, %v2494, %v2493
        %v2496 = vrot.slane %v2415, 2
        %v2497 = vsel %vm2481, %v2496, %v2495
        %v2498 = vrot.slane %v2416, 1
        %v2499 = vsel %vm2484, %v2498, %v2497
        %v2500 = vrot.slane %v2418, 7
        %v2501 = vsel %vm2466, %v2500, %v2417
        %v2502 = vrot.slane %v2419, 6
        %v2503 = vsel %vm2469, %v2502, %v2501
        %v2504 = vrot.slane %v2420, 5
        %v2505 = vsel %vm2472, %v2504, %v2503
        %v2506 = vrot.slane %v2421, 4
        %v2507 = vsel %vm2475, %v2506, %v2505
        %v2508 = vrot.slane %v2422, 3
        %v2509 = vsel %vm2478, %v2508, %v2507
        %v2510 = vrot.slane %v2423, 2
        %v2511 = vsel %vm2481, %v2510, %v2509
        %v2512 = vrot.slane %v2424, 1
        %v2513 = vsel %vm2484, %v2512, %v2511
        %v2514 = vrot.slane %v2426, 7
        %v2515 = vsel %vm2466, %v2514, %v2425
        %v2516 = vrot.slane %v2427, 6
        %v2517 = vsel %vm2469, %v2516, %v2515
        %v2518 = vrot.slane %v2428, 5
        %v2519 = vsel %vm2472, %v2518, %v2517
        %v2520 = vrot.slane %v2429, 4
        %v2521 = vsel %vm2475, %v2520, %v2519
        %v2522 = vrot.slane %v2430, 3
        %v2523 = vsel %vm2478, %v2522, %v2521
        %v2524 = vrot.slane %v2431, 2
        %v2525 = vsel %vm2481, %v2524, %v2523
        %v2526 = vrot.slane %v2432, 1
        %v2527 = vsel %vm2484, %v2526, %v2525
        %2532 = vst.msk [vmem:[%s286] sm:$0xff] %vm1140, %v2485
        %2533 = vst.msk [vmem:[%s286 + $0x8] sm:$0xff] %vm1140, %v2499
        %2534 = vst.msk [vmem:[%s286 + $0x10] sm:$0xff] %vm1140, %v2513
        %2535 = vst.msk [vmem:[%s286 + $0x18] sm:$0xff] %vm1140, %v2527
        %v2536 = vsel %vm2469, %v2465, %v2401
        %v2537 = vsel %vm2472, %v2468, %v2536
        %v2538 = vsel %vm2475, %v2471, %v2537
        %v2539 = vsel %vm2478, %v2474, %v2538
        %v2540 = vsel %vm2481, %v2477, %v2539
        %v2541 = vsel %vm2484, %v2480, %v2540
        %v2542 = vsel %vm2466, %v2409, %v2483
        %v2543 = vsel %vm2469, %v2486, %v2542
        %v2544 = vsel %vm2472, %v2488, %v2543
        %v2545 = vsel %vm2475, %v2490, %v2544
        %v2546 = vsel %vm2478, %v2492, %v2545
        %v2547 = vsel %vm2481, %v2494, %v2546
        %v2548 = vsel %vm2484, %v2496, %v2547
        %v2549 = vsel %vm2466, %v2417, %v2498
        %v2550 = vsel %vm2469, %v2500, %v2549
        %v2551 = vsel %vm2472, %v2502, %v2550
        %v2552 = vsel %vm2475, %v2504, %v2551
        %v2553 = vsel %vm2478, %v2506, %v2552
        %v2554 = vsel %vm2481, %v2508, %v2553
        %v2555 = vsel %vm2484, %v2510, %v2554
        %v2556 = vsel %vm2466, %v2425, %v2512
        %v2557 = vsel %vm2469, %v2514, %v2556
        %v2558 = vsel %vm2472, %v2516, %v2557
        %v2559 = vsel %vm2475, %v2518, %v2558
        %v2560 = vsel %vm2478, %v2520, %v2559
        %v2561 = vsel %vm2481, %v2522, %v2560
        %v2562 = vsel %vm2484, %v2524, %v2561
        %s2568 = scalar_lea.vmem %s286, 32 [#allocation8]
        %vm2569 = vcmask 523265
        %2570 = vst.msk [vmem:[%s2568 - $0x1] sm:$0xfe] %vm2569, %v2541
        %2571 = vst.msk [vmem:[%s2568 + $0x7] sm:$0xff] %vm1140, %v2548
        %2572 = vst.msk [vmem:[%s2568 + $0xf] sm:$0xff] %vm1140, %v2555
        %2573 = vst.msk [vmem:[%s2568 + $0x17] sm:$0xff] %vm1140, %v2562
        %vm2574 = vcmask 516096
        %2575 = vst.msk [vmem:[%s2568 + $0x1f] sm:$0x1] %vm2574, %v2526
        %s2576 = sand.u32 %s125, 1
        %s2577 = scalar_lea.sflag [#allocation5], %s2576
        %s2578 = sand.u32 %s125, 1
        %s2579 = smul.addr %s2578, 64
        %s2580 = scalar_lea.vmem [#allocation8], %s2579
        // Predicated region
        $region45: #{tpu_custom_call.1} parent=31 // pred_check
          %p2581 = pneg %p135
        $region46: #{tpu_custom_call.1} parent=31 // pred_check_branch
          %2583 = sbr.rel (%p2581) target = $region48
        $region47: #{tpu_custom_call.1} parent=31 // pred_region
          #allocation12 [shape = 'u32[6]{0}', space=smem, size = 0x18, scoped, tag = 'DMA stride descriptor']
          %s2584 = smul.u32 4, %s27
          %2586 = vsyncadd %s2577, 0
          %s2587 = sadd.s32 %s28, %s2584
          %s2588 = smul.addr %s2587, 8
          %s2589 = scalar_lea.hbm %s3, %s2588
          %s2591 = sshll.u32 1, 14
          %s2592 = sxor.u32 4294967295, %s2591
          %s2595 = sshll.u32 7, 18
          %s2596 = sxor.u32 4294967295, %s2595
          %s2597 = sand.u32 0, %s2596
          %s2599 = sor.u32 %s2597, 0
          %s2600 = sshll.u32 %s2580, 4
          %s2601 = int_to_ptr.vmem [resolvable:$true] %s2600
          %s2602 = sshll.u32 %s2589, 4
          %s2603 = int_to_ptr.hbm [resolvable:$true] %s2602
          %2609 = sst [smem:[#allocation12]] 512
          %s2610 = scalar_lea.smem [#allocation12], 1
          %2611 = sst [smem:[%s2610]] 1024
          %s2612 = scalar_lea.smem [#allocation12], 2
          %2613 = sst [smem:[%s2612]] 4
          %s2614 = scalar_lea.smem [#allocation12], 3
          %2615 = sst [smem:[%s2614]] 128
          %s2616 = scalar_lea.smem [#allocation12], 4
          %2617 = sst [smem:[%s2616]] 128
          %s2618 = scalar_lea.smem [#allocation12], 5
          %2619 = sst [smem:[%s2618]] 8
          %2621 = dma.general %s2601, 1024, %s2603, %s2577, [#allocation11], [#allocation12], %s2599, 0
        $region48: #{tpu_custom_call.1} parent=31 // pred_fallthru
          _
      $region32: #{tpu_custom_call.1} parent=5 // pred_fallthru
        _
      %p2622 = scmp.le.s32.totalorder 2, %s18
      // Predicated region
      $region49: #{tpu_custom_call.1} parent=5 // pred_check
        %p2623 = pneg %p2622
      $region50: #{tpu_custom_call.1} parent=5 // pred_check_branch
        %2625 = sbr.rel (%p2623) target = $region52
      $region51: #{tpu_custom_call.1} parent=5 // pred_region
        %s2626 = ssub.s32 %s18, 2
        // Predicated region
        $region53: #{tpu_custom_call.1} parent=51 // pred_check
          %p2627 = pneg %p141
        $region54: #{tpu_custom_call.1} parent=51 // pred_check_branch
          %2629 = sbr.rel (%p2627) target = $region56
        $region55: #{tpu_custom_call.1} parent=51 // pred_region
          %s2630 = sand.u32 %s126, 1
          %s2631 = scalar_lea.sflag [#allocation5], %s2630
          %s2632 = sand.u32 %s126, 1
          %s2633 = smul.addr %s2632, 64
          %s2634 = scalar_lea.vmem [#allocation8], %s2633
          %2636 = dma.done %s2631, 1024
        $region56: #{tpu_custom_call.1} parent=51 // pred_fallthru
          _
      $region52: #{tpu_custom_call.1} parent=5 // pred_fallthru
        _
    $region6: #{tpu_custom_call.1} parent=1 // loop_footer
      %s22 = sadd.s32 1, %s18
    $region7: #{tpu_custom_call.1} parent=1 // loop_footer_branch
      %17 = sbr.rel target = $region3
    $region8: #{tpu_custom_call.1} parent=1 // loop_exit
      _
    %2637 = vsyncpa [#allocation4], 1
    %s2638 = scalar_lea.sflag [#allocation4], 1
    %2639 = vsyncpa %s2638, 1
    %2640 = vsyncpa [#allocation7], 1
    %s2641 = scalar_lea.sflag [#allocation7], 1
    %2642 = vsyncpa %s2641, 1
    %2643 = vsyncpa [#allocation5], 1
    %s2644 = scalar_lea.sflag [#allocation5], 1
    %2645 = vsyncpa %s2644, 1

</llo_original>
